<compile_context>
chip_gen: v7x
topology: tpu7x:2x2x1
jax: 0.10.0
libtpu: 0.0.40
codegen_flags: <defaults>
</compile_context>

<pallas_src>
import functools

import jax
import jax.numpy as jnp
from jax.experimental import pallas as pl
from jax.experimental.pallas import tpu as pltpu


def rnn_forward_kernel(ids_ref, emb_tbl_ref, gamma_ref, beta_ref,
                       w_ih0_ref, w_ih_hi_ref, w_hh_ref, b_ref,
                       w_fc_ref, b_fc_ref,
                       logits_ref, hidden_ref,
                       *, batch, seq_len, vocab, num_layers, last_only):
    """Embedding -> LayerNorm -> stacked tanh RNN -> Linear, one invocation.

    ids_ref     : (L*N, 1)  int32  token ids, time-major (row = t*N + n)
    emb_tbl_ref : (V, E)    f32    embedding table
    gamma_ref   : (1, E)    f32    LayerNorm weight
    beta_ref    : (1, E)    f32    LayerNorm bias
    w_ih0_ref   : (E, H)    f32    layer-0 input weights (pre-transposed)
    w_ih_hi_ref : (max(num_layers-1,1), H, H) f32  input weights, layers >= 1
    w_hh_ref    : (num_layers, H, H) f32  recurrent weights (pre-transposed)
    b_ref       : (num_layers, 1, H) f32  combined bias (b_ih + b_hh)
    w_fc_ref    : (H, O)    f32    final linear weight (pre-transposed)
    b_fc_ref    : (1, O)    f32    final linear bias
    logits_ref  : (N, O) f32 if last_only else (1, L, O) f32
    hidden_ref  : (num_layers, N, H) f32  final hidden state per layer
    """
    N, L, V = batch, seq_len, vocab
    NL = N * L
    H = w_hh_ref.shape[-1]

    # ---- Embedding gather as a one-hot matmul (table is only KiB) ----------
    ids = ids_ref[...]                                            # (L*N, 1)
    onehot = (ids == jax.lax.broadcasted_iota(jnp.int32, (NL, V), 1)
              ).astype(jnp.float32)                               # (L*N, V)
    emb = jnp.dot(onehot, emb_tbl_ref[...],
                  preferred_element_type=jnp.float32)             # (L*N, E)

    # ---- LayerNorm over the feature axis ------------------------------------
    mean = jnp.mean(emb, axis=-1, keepdims=True)
    var = jnp.mean((emb - mean) ** 2, axis=-1, keepdims=True)
    xn = (emb - mean) * jax.lax.rsqrt(var + 1e-5)
    xn = xn * gamma_ref[...] + beta_ref[...]                      # (L*N, E)

    # ---- Stacked tanh RNN ----------------------------------------------------
    layer_in = xn                      # (L*N, E|H), time-major rows
    h = jnp.zeros((N, H), jnp.float32)
    for layer in range(num_layers):
        w_ih = w_ih0_ref[...] if layer == 0 else w_ih_hi_ref[layer - 1]
        w_hh = w_hh_ref[layer]
        # Hoisted input projection: one batched MXU matmul + bias per layer.
        xproj = (jnp.dot(layer_in, w_ih, preferred_element_type=jnp.float32)
                 + b_ref[layer])                                  # (L*N, H)
        h = jnp.zeros((N, H), jnp.float32)
        hs = []
        for t in range(L):             # L small & static -> fully unrolled
            h = jnp.tanh(xproj[t * N:(t + 1) * N, :]
                         + jnp.dot(h, w_hh,
                                   preferred_element_type=jnp.float32))
            hs.append(h)
        hidden_ref[layer] = h
        # The final layer's full sequence is only needed on the N == 1 path.
        if (layer + 1 < num_layers) or (not last_only):
            layer_in = jnp.concatenate(hs, axis=0)                # (L*N, H)

    # ---- Final Linear --------------------------------------------------------
    if last_only:                       # N > 1: fc(out[:, -1, :])
        logits_ref[...] = (
            jnp.dot(h, w_fc_ref[...], preferred_element_type=jnp.float32)
            + b_fc_ref[...])
    else:                               # N == 1: fc over the whole sequence
        logits = (jnp.dot(layer_in, w_fc_ref[...],
                          preferred_element_type=jnp.float32)
                  + b_fc_ref[...])                                # (L, O)
        logits_ref[0] = logits


@jax.jit
def rnn_forward(x, params):
    """x: (N, L) int32 token ids.

    Returns (logits, hidden): logits is (N, O) if N > 1 else (1, L, O);
    hidden is (num_layers, N, H). Mirrors the PyTorch module's batched path.
    """
    # TODO(synk): the unbatched (L,) 1-D input path of the module is not implemented.
    (emb_table, gamma, beta, w_ih0, w_ih_hi, w_hh, b, w_fc, b_fc) = params
    N, L = x.shape
    V, E = emb_table.shape
    num_layers, _, H = w_hh.shape
    O = w_fc.shape[1]
    last_only = N > 1                     # static (derived from shapes)

    # Time-major flattened ids (row = t*N + n); plain-JAX glue on a tiny int
    # array, essentially free and keeps the kernel's time-step slices static.
    ids_tm = x.T.reshape(L * N, 1).astype(jnp.int32)

    logits_shape = (N, O) if last_only else (1, L, O)
    kernel = functools.partial(
        rnn_forward_kernel, batch=N, seq_len=L, vocab=V,
        num_layers=num_layers, last_only=last_only)

    vmem = pl.BlockSpec(memory_space=pltpu.MemorySpace.VMEM)
    logits, hidden = pl.pallas_call(
        kernel,
        out_shape=(
            jax.ShapeDtypeStruct(logits_shape, jnp.float32),
            jax.ShapeDtypeStruct((num_layers, N, H), jnp.float32),
        ),
        in_specs=[vmem] * 10,
        out_specs=(vmem, vmem),
    )(ids_tm, emb_table, gamma, beta, w_ih0, w_ih_hi, w_hh, b, w_fc, b_fc)
    return logits, hidden


def rnn_forward_ref(x, params):
    """Pure-JAX reference mirroring the PyTorch forward (batched path)."""
    (emb_table, gamma, beta, w_ih0, w_ih_hi, w_hh, b, w_fc, b_fc) = params
    N, L = x.shape
    num_layers, _, H = w_hh.shape
    hi = jax.lax.Precision.HIGHEST

    emb = jnp.take(emb_table, x, axis=0).astype(jnp.float32)     # (N, L, E)
    mean = emb.mean(-1, keepdims=True)
    var = ((emb - mean) ** 2).mean(-1, keepdims=True)
    xn = (emb - mean) * jax.lax.rsqrt(var + 1e-5) * gamma + beta

    layer_in = xn
    hiddens = []
    for layer in range(num_layers):
        w_ih = w_ih0 if layer == 0 else w_ih_hi[layer - 1]
        h = jnp.zeros((N, H), jnp.float32)
        outs = []
        for t in range(L):
            h = jnp.tanh(jnp.dot(layer_in[:, t, :], w_ih, precision=hi)
                         + jnp.dot(h, w_hh[layer], precision=hi)
                         + b[layer])
            outs.append(h)
        layer_in = jnp.stack(outs, axis=1)                        # (N, L, H)
        hiddens.append(h)
    hidden = jnp.stack(hiddens, axis=0)                           # (nl, N, H)

    out = layer_in[:, -1, :] if N > 1 else layer_in
    logits = jnp.dot(out, w_fc, precision=hi) + b_fc
    return logits, hidden


def init_params(key, input_size, output_size, embedding_dim, hidden_size,
                num_layers):
    """Deterministic synthetic parameters matching the nn.Module shapes."""
    ks = jax.random.split(key, 8)
    k = 1.0 / jnp.sqrt(jnp.float32(hidden_size))

    emb_table = jax.random.normal(ks[0], (input_size, embedding_dim), jnp.float32)
    gamma = jnp.ones((1, embedding_dim), jnp.float32)
    beta = jnp.zeros((1, embedding_dim), jnp.float32)

    # nn.RNN weights, stored pre-transposed for x @ W layout.
    w_ih0 = jax.random.uniform(ks[1], (embedding_dim, hidden_size),
                               jnp.float32, -k, k)
    w_ih_hi = jax.random.uniform(ks[2],
                                 (max(num_layers - 1, 1), hidden_size, hidden_size),
                                 jnp.float32, -k, k)
    w_hh = jax.random.uniform(ks[3], (num_layers, hidden_size, hidden_size),
                              jnp.float32, -k, k)
    b_ih = jax.random.uniform(ks[4], (num_layers, 1, hidden_size),
                              jnp.float32, -k, k)
    b_hh = jax.random.uniform(ks[5], (num_layers, 1, hidden_size),
                              jnp.float32, -k, k)
    b = b_ih + b_hh  # mathematically identical to adding both in the cell

    w_fc = jax.random.uniform(ks[6], (hidden_size, output_size),
                              jnp.float32, -k, k)
    b_fc = jax.random.uniform(ks[7], (1, output_size), jnp.float32, -k, k)

    return (emb_table, gamma, beta, w_ih0, w_ih_hi, w_hh, b, w_fc, b_fc)


if __name__ == "__main__":
    # Small shapes consistent with the module.
    input_size = 16      # vocab size
    output_size = 16
    embedding_dim = 32
    hidden_size = 32
    num_layers = 2
    N, L = 2, 8          # batch, sequence length

    key = jax.random.PRNGKey(0)
    pkey, xkey = jax.random.split(key)
    params = init_params(pkey, input_size, output_size, embedding_dim,
                         hidden_size, num_layers)
    x = jax.random.randint(xkey, (N, L), 0, input_size, dtype=jnp.int32)

    # --- Batched path (N > 1): logits over the last timestep only -----------
    logits, hidden = rnn_forward(x, params)
    jax.block_until_ready((logits, hidden))
    ref_logits, ref_hidden = rnn_forward_ref(x, params)

    assert logits.shape == (N, output_size)
    assert hidden.shape == (num_layers, N, hidden_size)
    assert jnp.allclose(logits, ref_logits, atol=2e-2, rtol=2e-2)
    assert jnp.allclose(hidden, ref_hidden, atol=2e-2, rtol=2e-2)

    # --- N == 1 path: fc applied over the full sequence ----------------------
    x1 = x[:1]
    logits1, hidden1 = rnn_forward(x1, params)
    jax.block_until_ready((logits1, hidden1))
    ref_logits1, ref_hidden1 = rnn_forward_ref(x1, params)

    assert logits1.shape == (1, L, output_size)
    assert hidden1.shape == (num_layers, 1, hidden_size)
    assert jnp.allclose(logits1, ref_logits1, atol=2e-2, rtol=2e-2)
    assert jnp.allclose(hidden1, ref_hidden1, atol=2e-2, rtol=2e-2)

    print("KERNEL_OK")
</pallas_src>

<mosaic_0001>
module attributes {stable_mosaic.version = 11 : i64} {
  func.func @rnn_forward_kernel(%arg0: memref<16x1xi32, #tpu.memory_space<vmem>>, %arg1: memref<16x32xf32, #tpu.memory_space<vmem>>, %arg2: memref<1x32xf32, #tpu.memory_space<vmem>>, %arg3: memref<1x32xf32, #tpu.memory_space<vmem>>, %arg4: memref<32x32xf32, #tpu.memory_space<vmem>>, %arg5: memref<1x32x32xf32, #tpu.memory_space<vmem>>, %arg6: memref<2x32x32xf32, #tpu.memory_space<vmem>>, %arg7: memref<2x1x32xf32, #tpu.memory_space<vmem>>, %arg8: memref<32x16xf32, #tpu.memory_space<vmem>>, %arg9: memref<1x16xf32, #tpu.memory_space<vmem>>, %arg10: memref<2x16xf32, #tpu.memory_space<vmem>>, %arg11: memref<2x2x32xf32, #tpu.memory_space<vmem>>) attributes {dimension_semantics = [], scalar_prefetch = 0 : i64, scratch_operands = 0 : i64, tpu.core_type = #tpu.core_type<tc>} {
    %c0 = arith.constant 0 : index
    %c0_0 = arith.constant 0 : index
    %0 = vector.load %arg0[%c0, %c0_0] : memref<16x1xi32, #tpu.memory_space<vmem>>, vector<16x1xi32>
    %1 = tpu.iota {dimensions = array<i32: 1>} : vector<16x16xi32>
    %2 = vector.broadcast %0 : vector<16x1xi32> to vector<16x16xi32>
    %3 = arith.cmpi eq, %2, %1 : vector<16x16xi32>
    %4 = arith.extui %3 : vector<16x16xi1> to vector<16x16xi32>
    %5 = arith.sitofp %4 : vector<16x16xi32> to vector<16x16xf32>
    %c0_1 = arith.constant 0 : index
    %c0_2 = arith.constant 0 : index
    %6 = vector.load %arg1[%c0_1, %c0_2] : memref<16x32xf32, #tpu.memory_space<vmem>>, vector<16x32xf32>
    %cst = arith.constant dense<0.000000e+00> : vector<16x32xf32>
    %7 = tpu.matmul %5, %6, %cst {dimension_numbers = #tpu.dot_dimension_numbers<[1], [0], [0], [1], [0, 0, 1, 1], [], []>} : vector<16x16xf32>, vector<16x32xf32>, vector<16x32xf32> -> vector<16x32xf32>
    %cst_3 = arith.constant dense<0.000000e+00> : vector<16xf32>
    %8 = vector.multi_reduction <add>, %7, %cst_3 [1] : vector<16x32xf32> to vector<16xf32>
    %9 = vector.shape_cast %8 : vector<16xf32> to vector<16x1xf32>
    %cst_4 = arith.constant 3.200000e+01 : f32
    %10 = vector.broadcast %cst_4 : f32 to vector<16x1xf32>
    %11 = arith.divf %9, %10 : vector<16x1xf32>
    %12 = vector.broadcast %11 : vector<16x1xf32> to vector<16x32xf32>
    %13 = arith.subf %7, %12 : vector<16x32xf32>
    %14 = arith.mulf %13, %13 : vector<16x32xf32>
    %cst_5 = arith.constant dense<0.000000e+00> : vector<16xf32>
    %15 = vector.multi_reduction <add>, %14, %cst_5 [1] : vector<16x32xf32> to vector<16xf32>
    %16 = vector.shape_cast %15 : vector<16xf32> to vector<16x1xf32>
    %cst_6 = arith.constant 3.200000e+01 : f32
    %17 = vector.broadcast %cst_6 : f32 to vector<16x1xf32>
    %18 = arith.divf %16, %17 : vector<16x1xf32>
    %19 = vector.broadcast %11 : vector<16x1xf32> to vector<16x32xf32>
    %20 = arith.subf %7, %19 : vector<16x32xf32>
    %cst_7 = arith.constant 9.99999974E-6 : f32
    %21 = vector.broadcast %cst_7 : f32 to vector<16x1xf32>
    %22 = arith.addf %18, %21 : vector<16x1xf32>
    %23 = math.rsqrt %22 : vector<16x1xf32>
    %24 = vector.broadcast %23 : vector<16x1xf32> to vector<16x32xf32>
    %25 = arith.mulf %20, %24 : vector<16x32xf32>
    %c0_8 = arith.constant 0 : index
    %c0_9 = arith.constant 0 : index
    %26 = vector.load %arg2[%c0_8, %c0_9] : memref<1x32xf32, #tpu.memory_space<vmem>>, vector<1x32xf32>
    %27 = vector.broadcast %26 : vector<1x32xf32> to vector<16x32xf32>
    %28 = arith.mulf %25, %27 : vector<16x32xf32>
    %c0_10 = arith.constant 0 : index
    %c0_11 = arith.constant 0 : index
    %29 = vector.load %arg3[%c0_10, %c0_11] : memref<1x32xf32, #tpu.memory_space<vmem>>, vector<1x32xf32>
    %30 = vector.broadcast %29 : vector<1x32xf32> to vector<16x32xf32>
    %31 = arith.addf %28, %30 : vector<16x32xf32>
    %c0_12 = arith.constant 0 : index
    %c0_13 = arith.constant 0 : index
    %32 = vector.load %arg4[%c0_12, %c0_13] : memref<32x32xf32, #tpu.memory_space<vmem>>, vector<32x32xf32>
    %c0_14 = arith.constant 0 : index
    %c0_15 = arith.constant 0 : index
    %c0_16 = arith.constant 0 : index
    %33 = vector.load %arg6[%c0_14, %c0_15, %c0_16] : memref<2x32x32xf32, #tpu.memory_space<vmem>>, vector<1x32x32xf32>
    %34 = vector.shape_cast %33 : vector<1x32x32xf32> to vector<32x32xf32>
    %cst_17 = arith.constant dense<0.000000e+00> : vector<16x32xf32>
    %35 = tpu.matmul %31, %32, %cst_17 {dimension_numbers = #tpu.dot_dimension_numbers<[1], [0], [0], [1], [0, 0, 1, 1], [], []>} : vector<16x32xf32>, vector<32x32xf32>, vector<16x32xf32> -> vector<16x32xf32>
    %c0_18 = arith.constant 0 : index
    %c0_19 = arith.constant 0 : index
    %c0_20 = arith.constant 0 : index
    %36 = vector.load %arg7[%c0_18, %c0_19, %c0_20] : memref<2x1x32xf32, #tpu.memory_space<vmem>>, vector<1x1x32xf32>
    %37 = vector.shape_cast %36 : vector<1x1x32xf32> to vector<1x32xf32>
    %38 = vector.broadcast %37 : vector<1x32xf32> to vector<16x32xf32>
    %39 = arith.addf %35, %38 : vector<16x32xf32>
    %cst_21 = arith.constant 0.000000e+00 : f32
    %40 = vector.broadcast %cst_21 : f32 to vector<2x32xf32>
    %41 = vector.extract_strided_slice %39 {offsets = [0, 0], sizes = [2, 32], strides = [1, 1]} : vector<16x32xf32> to vector<2x32xf32>
    %cst_22 = arith.constant dense<0.000000e+00> : vector<2x32xf32>
    %42 = tpu.matmul %40, %34, %cst_22 {dimension_numbers = #tpu.dot_dimension_numbers<[1], [0], [0], [1], [0, 0, 1, 1], [], []>} : vector<2x32xf32>, vector<32x32xf32>, vector<2x32xf32> -> vector<2x32xf32>
    %43 = arith.addf %41, %42 : vector<2x32xf32>
    %44 = math.tanh %43 : vector<2x32xf32>
    %45 = vector.extract_strided_slice %39 {offsets = [2, 0], sizes = [2, 32], strides = [1, 1]} : vector<16x32xf32> to vector<2x32xf32>
    %cst_23 = arith.constant dense<0.000000e+00> : vector<2x32xf32>
    %46 = tpu.matmul %44, %34, %cst_23 {dimension_numbers = #tpu.dot_dimension_numbers<[1], [0], [0], [1], [0, 0, 1, 1], [], []>} : vector<2x32xf32>, vector<32x32xf32>, vector<2x32xf32> -> vector<2x32xf32>
    %47 = arith.addf %45, %46 : vector<2x32xf32>
    %48 = math.tanh %47 : vector<2x32xf32>
    %49 = vector.extract_strided_slice %39 {offsets = [4, 0], sizes = [2, 32], strides = [1, 1]} : vector<16x32xf32> to vector<2x32xf32>
    %cst_24 = arith.constant dense<0.000000e+00> : vector<2x32xf32>
    %50 = tpu.matmul %48, %34, %cst_24 {dimension_numbers = #tpu.dot_dimension_numbers<[1], [0], [0], [1], [0, 0, 1, 1], [], []>} : vector<2x32xf32>, vector<32x32xf32>, vector<2x32xf32> -> vector<2x32xf32>
    %51 = arith.addf %49, %50 : vector<2x32xf32>
    %52 = math.tanh %51 : vector<2x32xf32>
    %53 = vector.extract_strided_slice %39 {offsets = [6, 0], sizes = [2, 32], strides = [1, 1]} : vector<16x32xf32> to vector<2x32xf32>
    %cst_25 = arith.constant dense<0.000000e+00> : vector<2x32xf32>
    %54 = tpu.matmul %52, %34, %cst_25 {dimension_numbers = #tpu.dot_dimension_numbers<[1], [0], [0], [1], [0, 0, 1, 1], [], []>} : vector<2x32xf32>, vector<32x32xf32>, vector<2x32xf32> -> vector<2x32xf32>
    %55 = arith.addf %53, %54 : vector<2x32xf32>
    %56 = math.tanh %55 : vector<2x32xf32>
    %57 = vector.extract_strided_slice %39 {offsets = [8, 0], sizes = [2, 32], strides = [1, 1]} : vector<16x32xf32> to vector<2x32xf32>
    %cst_26 = arith.constant dense<0.000000e+00> : vector<2x32xf32>
    %58 = tpu.matmul %56, %34, %cst_26 {dimension_numbers = #tpu.dot_dimension_numbers<[1], [0], [0], [1], [0, 0, 1, 1], [], []>} : vector<2x32xf32>, vector<32x32xf32>, vector<2x32xf32> -> vector<2x32xf32>
    %59 = arith.addf %57, %58 : vector<2x32xf32>
    %60 = math.tanh %59 : vector<2x32xf32>
    %61 = vector.extract_strided_slice %39 {offsets = [10, 0], sizes = [2, 32], strides = [1, 1]} : vector<16x32xf32> to vector<2x32xf32>
    %cst_27 = arith.constant dense<0.000000e+00> : vector<2x32xf32>
    %62 = tpu.matmul %60, %34, %cst_27 {dimension_numbers = #tpu.dot_dimension_numbers<[1], [0], [0], [1], [0, 0, 1, 1], [], []>} : vector<2x32xf32>, vector<32x32xf32>, vector<2x32xf32> -> vector<2x32xf32>
    %63 = arith.addf %61, %62 : vector<2x32xf32>
    %64 = math.tanh %63 : vector<2x32xf32>
    %65 = vector.extract_strided_slice %39 {offsets = [12, 0], sizes = [2, 32], strides = [1, 1]} : vector<16x32xf32> to vector<2x32xf32>
    %cst_28 = arith.constant dense<0.000000e+00> : vector<2x32xf32>
    %66 = tpu.matmul %64, %34, %cst_28 {dimension_numbers = #tpu.dot_dimension_numbers<[1], [0], [0], [1], [0, 0, 1, 1], [], []>} : vector<2x32xf32>, vector<32x32xf32>, vector<2x32xf32> -> vector<2x32xf32>
    %67 = arith.addf %65, %66 : vector<2x32xf32>
    %68 = math.tanh %67 : vector<2x32xf32>
    %69 = vector.extract_strided_slice %39 {offsets = [14, 0], sizes = [2, 32], strides = [1, 1]} : vector<16x32xf32> to vector<2x32xf32>
    %cst_29 = arith.constant dense<0.000000e+00> : vector<2x32xf32>
    %70 = tpu.matmul %68, %34, %cst_29 {dimension_numbers = #tpu.dot_dimension_numbers<[1], [0], [0], [1], [0, 0, 1, 1], [], []>} : vector<2x32xf32>, vector<32x32xf32>, vector<2x32xf32> -> vector<2x32xf32>
    %71 = arith.addf %69, %70 : vector<2x32xf32>
    %72 = math.tanh %71 : vector<2x32xf32>
    %c0_30 = arith.constant 0 : index
    %c0_31 = arith.constant 0 : index
    %c0_32 = arith.constant 0 : index
    %73 = vector.load %arg11[%c0_30, %c0_31, %c0_32] : memref<2x2x32xf32, #tpu.memory_space<vmem>>, vector<1x2x32xf32>
    %74 = vector.shape_cast %73 : vector<1x2x32xf32> to vector<2x32xf32>
    %75 = vector.shape_cast %72 : vector<2x32xf32> to vector<1x2x32xf32>
    tpu.vector_store %arg11[%c0_30, %c0_31, %c0_32], %75 {strides = array<i32>} : memref<2x2x32xf32, #tpu.memory_space<vmem>>, vector<1x2x32xf32>,
    %76 = tpu.concatenate %44, %48, %52, %56, %60, %64, %68, %72 in 0 : vector<2x32xf32>, vector<2x32xf32>, vector<2x32xf32>, vector<2x32xf32>, vector<2x32xf32>, vector<2x32xf32>, vector<2x32xf32>, vector<2x32xf32> -> vector<16x32xf32>
    %c0_33 = arith.constant 0 : index
    %c0_34 = arith.constant 0 : index
    %c0_35 = arith.constant 0 : index
    %77 = vector.load %arg5[%c0_33, %c0_34, %c0_35] : memref<1x32x32xf32, #tpu.memory_space<vmem>>, vector<1x32x32xf32>
    %78 = vector.shape_cast %77 : vector<1x32x32xf32> to vector<32x32xf32>
    %c1 = arith.constant 1 : index
    %c0_36 = arith.constant 0 : index
    %c0_37 = arith.constant 0 : index
    %79 = vector.load %arg6[%c1, %c0_36, %c0_37] : memref<2x32x32xf32, #tpu.memory_space<vmem>>, vector<1x32x32xf32>
    %80 = vector.shape_cast %79 : vector<1x32x32xf32> to vector<32x32xf32>
    %cst_38 = arith.constant dense<0.000000e+00> : vector<16x32xf32>
    %81 = tpu.matmul %76, %78, %cst_38 {dimension_numbers = #tpu.dot_dimension_numbers<[1], [0], [0], [1], [0, 0, 1, 1], [], []>} : vector<16x32xf32>, vector<32x32xf32>, vector<16x32xf32> -> vector<16x32xf32>
    %c1_39 = arith.constant 1 : index
    %c0_40 = arith.constant 0 : index
    %c0_41 = arith.constant 0 : index
    %82 = vector.load %arg7[%c1_39, %c0_40, %c0_41] : memref<2x1x32xf32, #tpu.memory_space<vmem>>, vector<1x1x32xf32>
    %83 = vector.shape_cast %82 : vector<1x1x32xf32> to vector<1x32xf32>
    %84 = vector.broadcast %83 : vector<1x32xf32> to vector<16x32xf32>
    %85 = arith.addf %81, %84 : vector<16x32xf32>
    %cst_42 = arith.constant 0.000000e+00 : f32
    %86 = vector.broadcast %cst_42 : f32 to vector<2x32xf32>
    %87 = vector.extract_strided_slice %85 {offsets = [0, 0], sizes = [2, 32], strides = [1, 1]} : vector<16x32xf32> to vector<2x32xf32>
    %cst_43 = arith.constant dense<0.000000e+00> : vector<2x32xf32>
    %88 = tpu.matmul %86, %80, %cst_43 {dimension_numbers = #tpu.dot_dimension_numbers<[1], [0], [0], [1], [0, 0, 1, 1], [], []>} : vector<2x32xf32>, vector<32x32xf32>, vector<2x32xf32> -> vector<2x32xf32>
    %89 = arith.addf %87, %88 : vector<2x32xf32>
    %90 = math.tanh %89 : vector<2x32xf32>
    %91 = vector.extract_strided_slice %85 {offsets = [2, 0], sizes = [2, 32], strides = [1, 1]} : vector<16x32xf32> to vector<2x32xf32>
    %cst_44 = arith.constant dense<0.000000e+00> : vector<2x32xf32>
    %92 = tpu.matmul %90, %80, %cst_44 {dimension_numbers = #tpu.dot_dimension_numbers<[1], [0], [0], [1], [0, 0, 1, 1], [], []>} : vector<2x32xf32>, vector<32x32xf32>, vector<2x32xf32> -> vector<2x32xf32>
    %93 = arith.addf %91, %92 : vector<2x32xf32>
    %94 = math.tanh %93 : vector<2x32xf32>
    %95 = vector.extract_strided_slice %85 {offsets = [4, 0], sizes = [2, 32], strides = [1, 1]} : vector<16x32xf32> to vector<2x32xf32>
    %cst_45 = arith.constant dense<0.000000e+00> : vector<2x32xf32>
    %96 = tpu.matmul %94, %80, %cst_45 {dimension_numbers = #tpu.dot_dimension_numbers<[1], [0], [0], [1], [0, 0, 1, 1], [], []>} : vector<2x32xf32>, vector<32x32xf32>, vector<2x32xf32> -> vector<2x32xf32>
    %97 = arith.addf %95, %96 : vector<2x32xf32>
    %98 = math.tanh %97 : vector<2x32xf32>
    %99 = vector.extract_strided_slice %85 {offsets = [6, 0], sizes = [2, 32], strides = [1, 1]} : vector<16x32xf32> to vector<2x32xf32>
    %cst_46 = arith.constant dense<0.000000e+00> : vector<2x32xf32>
    %100 = tpu.matmul %98, %80, %cst_46 {dimension_numbers = #tpu.dot_dimension_numbers<[1], [0], [0], [1], [0, 0, 1, 1], [], []>} : vector<2x32xf32>, vector<32x32xf32>, vector<2x32xf32> -> vector<2x32xf32>
    %101 = arith.addf %99, %100 : vector<2x32xf32>
    %102 = math.tanh %101 : vector<2x32xf32>
    %103 = vector.extract_strided_slice %85 {offsets = [8, 0], sizes = [2, 32], strides = [1, 1]} : vector<16x32xf32> to vector<2x32xf32>
    %cst_47 = arith.constant dense<0.000000e+00> : vector<2x32xf32>
    %104 = tpu.matmul %102, %80, %cst_47 {dimension_numbers = #tpu.dot_dimension_numbers<[1], [0], [0], [1], [0, 0, 1, 1], [], []>} : vector<2x32xf32>, vector<32x32xf32>, vector<2x32xf32> -> vector<2x32xf32>
    %105 = arith.addf %103, %104 : vector<2x32xf32>
    %106 = math.tanh %105 : vector<2x32xf32>
    %107 = vector.extract_strided_slice %85 {offsets = [10, 0], sizes = [2, 32], strides = [1, 1]} : vector<16x32xf32> to vector<2x32xf32>
    %cst_48 = arith.constant dense<0.000000e+00> : vector<2x32xf32>
    %108 = tpu.matmul %106, %80, %cst_48 {dimension_numbers = #tpu.dot_dimension_numbers<[1], [0], [0], [1], [0, 0, 1, 1], [], []>} : vector<2x32xf32>, vector<32x32xf32>, vector<2x32xf32> -> vector<2x32xf32>
    %109 = arith.addf %107, %108 : vector<2x32xf32>
    %110 = math.tanh %109 : vector<2x32xf32>
    %111 = vector.extract_strided_slice %85 {offsets = [12, 0], sizes = [2, 32], strides = [1, 1]} : vector<16x32xf32> to vector<2x32xf32>
    %cst_49 = arith.constant dense<0.000000e+00> : vector<2x32xf32>
    %112 = tpu.matmul %110, %80, %cst_49 {dimension_numbers = #tpu.dot_dimension_numbers<[1], [0], [0], [1], [0, 0, 1, 1], [], []>} : vector<2x32xf32>, vector<32x32xf32>, vector<2x32xf32> -> vector<2x32xf32>
    %113 = arith.addf %111, %112 : vector<2x32xf32>
    %114 = math.tanh %113 : vector<2x32xf32>
    %115 = vector.extract_strided_slice %85 {offsets = [14, 0], sizes = [2, 32], strides = [1, 1]} : vector<16x32xf32> to vector<2x32xf32>
    %cst_50 = arith.constant dense<0.000000e+00> : vector<2x32xf32>
    %116 = tpu.matmul %114, %80, %cst_50 {dimension_numbers = #tpu.dot_dimension_numbers<[1], [0], [0], [1], [0, 0, 1, 1], [], []>} : vector<2x32xf32>, vector<32x32xf32>, vector<2x32xf32> -> vector<2x32xf32>
    %117 = arith.addf %115, %116 : vector<2x32xf32>
    %118 = math.tanh %117 : vector<2x32xf32>
    %c1_51 = arith.constant 1 : index
    %c0_52 = arith.constant 0 : index
    %c0_53 = arith.constant 0 : index
    %119 = vector.load %arg11[%c1_51, %c0_52, %c0_53] : memref<2x2x32xf32, #tpu.memory_space<vmem>>, vector<1x2x32xf32>
    %120 = vector.shape_cast %119 : vector<1x2x32xf32> to vector<2x32xf32>
    %121 = vector.shape_cast %118 : vector<2x32xf32> to vector<1x2x32xf32>
    tpu.vector_store %arg11[%c1_51, %c0_52, %c0_53], %121 {strides = array<i32>} : memref<2x2x32xf32, #tpu.memory_space<vmem>>, vector<1x2x32xf32>,
    %c0_54 = arith.constant 0 : index
    %c0_55 = arith.constant 0 : index
    %122 = vector.load %arg8[%c0_54, %c0_55] : memref<32x16xf32, #tpu.memory_space<vmem>>, vector<32x16xf32>
    %cst_56 = arith.constant dense<0.000000e+00> : vector<2x16xf32>
    %123 = tpu.matmul %118, %122, %cst_56 {dimension_numbers = #tpu.dot_dimension_numbers<[1], [0], [0], [1], [0, 0, 1, 1], [], []>} : vector<2x32xf32>, vector<32x16xf32>, vector<2x16xf32> -> vector<2x16xf32>
    %c0_57 = arith.constant 0 : index
    %c0_58 = arith.constant 0 : index
    %124 = vector.load %arg9[%c0_57, %c0_58] : memref<1x16xf32, #tpu.memory_space<vmem>>, vector<1x16xf32>
    %125 = vector.broadcast %124 : vector<1x16xf32> to vector<2x16xf32>
    %126 = arith.addf %123, %125 : vector<2x16xf32>
    %c0_59 = arith.constant 0 : index
    %c0_60 = arith.constant 0 : index
    %127 = vector.load %arg10[%c0_59, %c0_60] : memref<2x16xf32, #tpu.memory_space<vmem>>, vector<2x16xf32>
    tpu.vector_store %arg10[%c0_59, %c0_60], %126 {strides = array<i32>} : memref<2x16xf32, #tpu.memory_space<vmem>>, vector<2x16xf32>,
    return
  }
}

</mosaic_0001>

<llo_original>
// kernel: rnn_forward.1
$region0: #{rnn_forward.1}
  #allocation0 [shape = 'u32[]', space=smem, size = 0x4, offset = 0x4, fixed_abs, tag = 'smem constant byte address 0x4 - core index']
  #allocation1 [shape = 'u32[144,128]{1,0:T(1,128)}', space=vmem, size = 0x12000, scoped, tag = 'internal scratch']
  %s0 = inlined_call_operand.vmem [shape: s32[16,1], index: 0, kind: input, shape index: {}]
  %s1 = inlined_call_operand.hbm [shape: f32[16,32], index: 1, kind: input, shape index: {}]
  %s2 = inlined_call_operand.hbm [shape: f32[1,32], index: 2, kind: input, shape index: {}]
  %s3 = inlined_call_operand.hbm [shape: f32[1,32], index: 3, kind: input, shape index: {}]
  %s4 = inlined_call_operand.vmem [shape: f32[32,32], index: 4, kind: input, shape index: {}]
  %s5 = inlined_call_operand.hbm [shape: f32[1,32,32], index: 5, kind: input, shape index: {}]
  %s6 = inlined_call_operand.vmem [shape: f32[2,32,32], index: 6, kind: input, shape index: {}]
  %s7 = inlined_call_operand.hbm [shape: f32[2,1,32], index: 7, kind: input, shape index: {}]
  %s8 = inlined_call_operand.vmem [shape: f32[32,16], index: 8, kind: input, shape index: {}]
  %s9 = inlined_call_operand.vmem [shape: f32[1,16], index: 9, kind: input, shape index: {}]
  %s10 = inlined_call_operand.hbm [shape: f32[2,16], index: 10, kind: output, shape index: {0}]
  %s11 = inlined_call_operand.hbm [shape: f32[2,2,32], index: 11, kind: output, shape index: {1}]
  %12 = xla_tuple %s10, %s11
  %s13 = sld [smem:[#allocation0]]
  $region78: #{rnn_forward.1} parent=0
    _
  %s15 = ssub.s32 1, %s13
  %s16 = scalar_select 0, %s15, %s13
  $region1: #{rnn_forward.1} parent=0
    #allocation2 [shape = 'u8[8192]{0}', space=vmem, size = 0x2000, scoped, tag = 'input window, operand 1, single buffered']
    #allocation3 [shape = 's32[1]{0}', space=sflag, size = 0x4, scoped, tag = 'scoped memory for rnn_forward.1']
    #allocation4 [shape = 's32[1]{0}', space=sflag, size = 0x4, scoped, tag = 'scoped memory for rnn_forward.1']
    #allocation5 [shape = 'u8[512]{0}', space=vmem, size = 0x400, scoped, tag = 'input window, operand 2, single buffered']
    #allocation6 [shape = 's32[1]{0}', space=sflag, size = 0x4, scoped, tag = 'scoped memory for rnn_forward.1']
    #allocation7 [shape = 'u8[512]{0}', space=vmem, size = 0x400, scoped, tag = 'input window, operand 3, single buffered']
    #allocation8 [shape = 'u8[16384]{0}', space=vmem, size = 0x4000, scoped, tag = 'input window, operand 5, single buffered']
    #allocation9 [shape = 's32[1]{0}', space=sflag, size = 0x4, scoped, tag = 'scoped memory for rnn_forward.1']
    #allocation10 [shape = 'u8[1024]{0}', space=vmem, size = 0x400, scoped, tag = 'input window, operand 7, single buffered']
    #allocation11 [shape = 'u8[1024]{0}', space=vmem, size = 0x400, scoped, tag = 'output window, operand 0, single buffered']
    #allocation12 [shape = 'u8[2048]{0}', space=vmem, size = 0x800, scoped, tag = 'output window, operand 1, single buffered']
    #allocation13 [shape = 's32[1]{0}', space=sflag, size = 0x4, scoped, tag = 'scoped memory for rnn_forward.1']
    %17 = vsyncpa [#allocation3], 0
    %18 = vsyncpa [#allocation6], 0
    %19 = vsyncpa [#allocation9], 0
    %20 = vsyncpa [#allocation4], 0
    %21 = vsyncpa [#allocation13], 0
    // Predicated region
    $region2: #{rnn_forward.1} parent=1 // pred_check
      _
    $region3: #{rnn_forward.1} parent=1 // pred_check_branch
      %23 = sbr.rel (0) target = $region5
    $region4: #{rnn_forward.1} parent=1 // pred_region
      _
    $region5: #{rnn_forward.1} parent=1 // pred_fallthru
      _
    // Predicated region
    $region6: #{rnn_forward.1} parent=1 // pred_check
      _
    $region7: #{rnn_forward.1} parent=1 // pred_check_branch
      %25 = sbr.rel (0) target = $region9
    $region8: #{rnn_forward.1} parent=1 // pred_region
      %s27 = ssub.s32 256, 256
      %28 = vsyncadd [#allocation3], %s27
      %s29 = sshll.u32 [#allocation2], 4
      %s30 = int_to_ptr.vmem [resolvable:$true] %s29
      %35 = dma.hbm_to_vmem [thread:$0]  %s1, 256, %s30, [#allocation3], 128, 128, 8
    $region9: #{rnn_forward.1} parent=1 // pred_fallthru
      _
    // Predicated region
    $region10: #{rnn_forward.1} parent=1 // pred_check
      _
    $region11: #{rnn_forward.1} parent=1 // pred_check_branch
      %37 = sbr.rel (0) target = $region13
    $region12: #{rnn_forward.1} parent=1 // pred_region
      %s39 = ssub.s32 16, 16
      %40 = vsyncadd [#allocation6], %s39
      %s42 = sshll.u32 [#allocation5], 4
      %s43 = int_to_ptr.vmem [resolvable:$true] %s42
      %45 = dma.hbm_to_vmem [thread:$0]  %s2, 16, %s43, [#allocation6]
    $region13: #{rnn_forward.1} parent=1 // pred_fallthru
      _
    // Predicated region
    $region14: #{rnn_forward.1} parent=1 // pred_check
      _
    $region15: #{rnn_forward.1} parent=1 // pred_check_branch
      %47 = sbr.rel (0) target = $region17
    $region16: #{rnn_forward.1} parent=1 // pred_region
      %s49 = ssub.s32 16, 16
      %50 = vsyncadd [#allocation6], %s49
      %s52 = sshll.u32 [#allocation7], 4
      %s53 = int_to_ptr.vmem [resolvable:$true] %s52
      %55 = dma.hbm_to_vmem [thread:$0]  %s3, 16, %s53, [#allocation6]
    $region17: #{rnn_forward.1} parent=1 // pred_fallthru
      _
    // Predicated region
    $region18: #{rnn_forward.1} parent=1 // pred_check
      _
    $region19: #{rnn_forward.1} parent=1 // pred_check_branch
      %57 = sbr.rel (0) target = $region21
    $region20: #{rnn_forward.1} parent=1 // pred_region
      _
    $region21: #{rnn_forward.1} parent=1 // pred_fallthru
      _
    // Predicated region
    $region22: #{rnn_forward.1} parent=1 // pred_check
      _
    $region23: #{rnn_forward.1} parent=1 // pred_check_branch
      %59 = sbr.rel (0) target = $region25
    $region24: #{rnn_forward.1} parent=1 // pred_region
      %s61 = ssub.s32 512, 512
      %62 = vsyncadd [#allocation9], %s61
      %s63 = sshll.u32 [#allocation8], 4
      %s64 = int_to_ptr.vmem [resolvable:$true] %s63
      %69 = dma.hbm_to_vmem [thread:$0]  %s5, 512, %s64, [#allocation9], 128, 128, 8
    $region25: #{rnn_forward.1} parent=1 // pred_fallthru
      _
    // Predicated region
    $region26: #{rnn_forward.1} parent=1 // pred_check
      _
    $region27: #{rnn_forward.1} parent=1 // pred_check_branch
      %71 = sbr.rel (0) target = $region29
    $region28: #{rnn_forward.1} parent=1 // pred_region
      _
    $region29: #{rnn_forward.1} parent=1 // pred_fallthru
      _
    // Predicated region
    $region30: #{rnn_forward.1} parent=1 // pred_check
      _
    $region31: #{rnn_forward.1} parent=1 // pred_check_branch
      %73 = sbr.rel (0) target = $region33
    $region32: #{rnn_forward.1} parent=1 // pred_region
      %s75 = ssub.s32 32, 32
      %76 = vsyncadd [#allocation9], %s75
      %s77 = sshll.u32 [#allocation10], 4
      %s78 = int_to_ptr.vmem [resolvable:$true] %s77
      %83 = dma.hbm_to_vmem [thread:$0]  %s7, 32, %s78, [#allocation9], 16, 16, 1
    $region33: #{rnn_forward.1} parent=1 // pred_fallthru
      _
    // Predicated region
    $region34: #{rnn_forward.1} parent=1 // pred_check
      _
    $region35: #{rnn_forward.1} parent=1 // pred_check_branch
      %85 = sbr.rel (0) target = $region37
    $region36: #{rnn_forward.1} parent=1 // pred_region
      _
    $region37: #{rnn_forward.1} parent=1 // pred_fallthru
      _
    // Predicated region
    $region38: #{rnn_forward.1} parent=1 // pred_check
      _
    $region39: #{rnn_forward.1} parent=1 // pred_check_branch
      %87 = sbr.rel (0) target = $region41
    $region40: #{rnn_forward.1} parent=1 // pred_region
      _
    $region41: #{rnn_forward.1} parent=1 // pred_fallthru
      _
    // Predicated region
    $region42: #{rnn_forward.1} parent=1 // pred_check
      _
    $region43: #{rnn_forward.1} parent=1 // pred_check_branch
      %89 = sbr.rel (0) target = $region45
    $region44: #{rnn_forward.1} parent=1 // pred_region
      %90 = dma.done [#allocation3], 256
    $region45: #{rnn_forward.1} parent=1 // pred_fallthru
      _
    // Predicated region
    $region46: #{rnn_forward.1} parent=1 // pred_check
      _
    $region47: #{rnn_forward.1} parent=1 // pred_check_branch
      %92 = sbr.rel (0) target = $region49
    $region48: #{rnn_forward.1} parent=1 // pred_region
      %93 = dma.done [#allocation6], 16
    $region49: #{rnn_forward.1} parent=1 // pred_fallthru
      _
    // Predicated region
    $region50: #{rnn_forward.1} parent=1 // pred_check
      _
    $region51: #{rnn_forward.1} parent=1 // pred_check_branch
      %95 = sbr.rel (0) target = $region53
    $region52: #{rnn_forward.1} parent=1 // pred_region
      %96 = dma.done [#allocation6], 16
    $region53: #{rnn_forward.1} parent=1 // pred_fallthru
      _
    // Predicated region
    $region54: #{rnn_forward.1} parent=1 // pred_check
      _
    $region55: #{rnn_forward.1} parent=1 // pred_check_branch
      %98 = sbr.rel (0) target = $region57
    $region56: #{rnn_forward.1} parent=1 // pred_region
      %99 = dma.done [#allocation9], 512
    $region57: #{rnn_forward.1} parent=1 // pred_fallthru
      _
    // Predicated region
    $region58: #{rnn_forward.1} parent=1 // pred_check
      _
    $region59: #{rnn_forward.1} parent=1 // pred_check_branch
      %101 = sbr.rel (0) target = $region61
    $region60: #{rnn_forward.1} parent=1 // pred_region
      %102 = dma.done [#allocation9], 32
    $region61: #{rnn_forward.1} parent=1 // pred_fallthru
      _
    %v103 = vld [vmem:[%s0] sm:$0xff]
    %v104 = vld [vmem:[%s0 + $0x8] sm:$0xff]
    %v105 = vlaneseq
    %v106 = vand.u32 %v105, 127
    %107 = vset.pattern.permute.xlu0 0
    %108 = vperm.xlu0 %107, %v103
    %v109 = vpop.permute.xlu0 %108
    %110 = vset.pattern.permute.xlu0 0
    %111 = vperm.xlu0 %110, %v104
    %v112 = vpop.permute.xlu0 %111
    %vm113 = vcmp.eq.s32.totalorder %v109, %v106
    %vm114 = vcmp.eq.s32.totalorder %v112, %v106
    %v115 = vsel %vm113, 1, 0
    %v116 = vsel %vm114, 1, 0
    %v117 = vcvt.s32.f32 %v115
    %v118 = vcvt.s32.f32 %v116
    %v119 = vld [vmem:[#allocation2] sm:$0xff]
    %v120 = vld [vmem:[#allocation2 + $0x8] sm:$0xff]
    %vm121 = vcmask 130048
    %v123 = vsel %vm121, %v117, 0
    %v126 = vsel %vm121, %v118, 0
    %128 = vmatprep.subr.mxu0 0.0
    %129 = vmatpush1.msra.mxu0 %v119
    %130 = vmatprep.subr.mxu0 0.0
    %131 = vmatpush1.msra.mxu0 %v120
    %132 = vmatprep.subr.mxu0 0.0
    %133 = vmatpush1.msra.mxu0 0.0
    %134 = vmatprep.subr.mxu0 0.0
    %135 = vmatpush1.msra.mxu0 0.0
    %136 = vmatprep.subr.mxu0 0.0
    %137 = vmatpush1.msra.mxu0 0.0
    %138 = vmatprep.subr.mxu0 0.0
    %139 = vmatpush1.msra.mxu0 0.0
    %140 = vmatprep.subr.mxu0 0.0
    %141 = vmatpush1.msra.mxu0 0.0
    %142 = vmatprep.subr.mxu0 0.0
    %143 = vmatpush1.msra.mxu0 0.0
    %144 = vmatprep.subr.mxu0 0.0
    %145 = vmatpush1.msra.mxu0 0.0
    %146 = vmatprep.subr.mxu0 0.0
    %147 = vmatpush1.msra.mxu0 0.0
    %148 = vmatprep.subr.mxu0 0.0
    %149 = vmatpush1.msra.mxu0 0.0
    %150 = vmatprep.subr.mxu0 0.0
    %151 = vmatpush1.msra.mxu0 0.0
    %152 = vmatprep.subr.mxu0 0.0
    %153 = vmatpush1.msra.mxu0 0.0
    %154 = vmatprep.subr.mxu0 0.0
    %155 = vmatpush1.msra.mxu0 0.0
    %156 = vmatprep.subr.mxu0 0.0
    %157 = vmatpush1.msra.mxu0 0.0
    %158 = vmatprep.subr.mxu0 0.0
    %159 = vmatpush1.msra.mxu0 0.0
    %160 = vmatprep.subr.mxu0 0.0
    %161 = vmatpush1.msra.mxu0 0.0
    %162 = vmatprep.subr.mxu0 0.0
    %163 = vmatpush1.msra.mxu0 0.0
    %164 = vmatprep.subr.mxu0 0.0
    %165 = vmatpush1.msra.mxu0 0.0
    %166 = vmatprep.subr.mxu0 0.0
    %167 = vmatpush1.msra.mxu0 0.0
    %168 = vmatprep.subr.mxu0 0.0
    %169 = vmatpush1.msra.mxu0 0.0
    %170 = vmatprep.subr.mxu0 0.0
    %171 = vmatpush1.msra.mxu0 0.0
    %172 = vmatprep.subr.mxu0 0.0
    %173 = vmatpush1.msra.mxu0 0.0
    %174 = vmatprep.subr.mxu0 0.0
    %175 = vmatpush1.msra.mxu0 0.0
    %176 = vmatprep.subr.mxu0 0.0
    %177 = vmatpush1.msra.mxu0 0.0
    %178 = vmatprep.subr.mxu0 0.0
    %179 = vmatpush1.msra.mxu0 0.0
    %180 = vmatprep.subr.mxu0 0.0
    %181 = vmatpush1.msra.mxu0 0.0
    %182 = vmatprep.subr.mxu0 0.0
    %183 = vmatpush1.msra.mxu0 0.0
    %184 = vmatprep.subr.mxu0 0.0
    %185 = vmatpush1.msra.mxu0 0.0
    %186 = vmatprep.subr.mxu0 0.0
    %187 = vmatpush1.msra.mxu0 0.0
    %188 = vmatprep.subr.mxu0 0.0
    %189 = vmatpush1.msra.mxu0 0.0
    %190 = vmatprep.subr.mxu0 0.0
    %191 = vmatpush1.msra.mxu0 0.0
    %192 = vmatprep.mubr.f32.mxu0 0.0
    %193 = vmatmul.mubr.f32.gmra.mrb[0].mxu0 %v123
    %v194 = vpop.f32.mrb[0].mxu0
    %v195 = vadd.f32 0.0, %v194
    %v196 = vpop.f32.mrb[0].mxu0
    %197 = vmatprep.mubr.f32.mxu0 0.0
    %198 = vmatmul.mubr.f32.gmra.mrb[0].mxu0 %v126
    %v199 = vpop.f32.mrb[0].mxu0
    %v200 = vadd.f32 0.0, %v199
    %v201 = vpop.f32.mrb[0].mxu0
    %202 = vdwg.mxu0
    %vm203 = vcmask 261120
    %v204 = vsel %vm203, %v195, 0.0
    %205 = vadd.xlane.f32.xlu0 %v204
    %v206 = vpop.xlane.xlu0 %205
    %v207 = vsel %vm203, %v200, 0.0
    %208 = vadd.xlane.f32.xlu0 %v207
    %v209 = vpop.xlane.xlu0 %208
    %v210 = vrcp.pop 32.0
    %v211 = vmul.f32 %v206, %v210
    %v212 = vmul.f32 %v209, %v210
    %v213 = vsub.f32 %v195, %v211
    %v214 = vsub.f32 %v200, %v212
    %v215 = vmul.f32 %v213, %v213
    %v216 = vmul.f32 %v214, %v214
    %v217 = vsel %vm203, %v215, 0.0
    %218 = vadd.xlane.f32.xlu0 %v217
    %v219 = vpop.xlane.xlu0 %218
    %v220 = vsel %vm203, %v216, 0.0
    %221 = vadd.xlane.f32.xlu0 %v220
    %v222 = vpop.xlane.xlu0 %221
    %v223 = vmul.f32 %v219, %v210
    %v224 = vmul.f32 %v222, %v210
    %v225 = vadd.f32 %v223, 1e-05
    %v226 = vadd.f32 %v224, 1e-05
    %v227 = vrsqrt.pop %v225
    %v228 = vrsqrt.pop %v226
    %v229 = vmul.f32 %v213, %v227
    %v230 = vmul.f32 %v214, %v228
    %v231 = vld [vmem:[#allocation5] sm:$0x1]
    %v233 = vlaneseq
    %v234 = vshrl.u32 %v233, 7
    %v235 = vsub.s32 0, %v234
    %v236 = vrot.slane %v231, %v235
    %v238 = vmul.f32 %v229, %v236
    %v239 = vmul.f32 %v230, %v236
    %v240 = vld [vmem:[#allocation7] sm:$0x1]
    %v242 = vlaneseq
    %v243 = vshrl.u32 %v242, 7
    %v244 = vsub.s32 0, %v243
    %v245 = vrot.slane %v240, %v244
    %v247 = vadd.f32 %v238, %v245
    %v248 = vadd.f32 %v239, %v245
    %v249 = vld [vmem:[%s4] sm:$0xff]
    %v250 = vld [vmem:[%s4 + $0x8] sm:$0xff]
    %v251 = vld [vmem:[%s4 + $0x10] sm:$0xff]
    %v252 = vld [vmem:[%s4 + $0x18] sm:$0xff]
    %v253 = vld [vmem:[%s6] sm:$0xff]
    %v254 = vld [vmem:[%s6 + $0x8] sm:$0xff]
    %v255 = vld [vmem:[%s6 + $0x10] sm:$0xff]
    %v256 = vld [vmem:[%s6 + $0x18] sm:$0xff]
    %v257 = vld [vmem:[#allocation10] sm:$0x1]
    %v259 = vlaneseq
    %v260 = vshrl.u32 %v259, 7
    %v261 = vsub.s32 0, %v260
    %v262 = vrot.slane %v257, %v261
    %v265 = vsel %vm203, %v247, 0
    %v268 = vsel %vm203, %v248, 0
    %270 = vmatprep.subr.mxu0 0.0
    %271 = vmatpush1.msra.mxu0 %v249
    %272 = vmatprep.subr.mxu0 0.0
    %273 = vmatpush1.msra.mxu0 %v250
    %274 = vmatprep.subr.mxu0 0.0
    %275 = vmatpush1.msra.mxu0 %v251
    %276 = vmatprep.subr.mxu0 0.0
    %277 = vmatpush1.msra.mxu0 %v252
    %278 = vmatprep.subr.mxu0 0.0
    %279 = vmatpush1.msra.mxu0 0.0
    %280 = vmatprep.subr.mxu0 0.0
    %281 = vmatpush1.msra.mxu0 0.0
    %282 = vmatprep.subr.mxu0 0.0
    %283 = vmatpush1.msra.mxu0 0.0
    %284 = vmatprep.subr.mxu0 0.0
    %285 = vmatpush1.msra.mxu0 0.0
    %286 = vmatprep.subr.mxu0 0.0
    %287 = vmatpush1.msra.mxu0 0.0
    %288 = vmatprep.subr.mxu0 0.0
    %289 = vmatpush1.msra.mxu0 0.0
    %290 = vmatprep.subr.mxu0 0.0
    %291 = vmatpush1.msra.mxu0 0.0
    %292 = vmatprep.subr.mxu0 0.0
    %293 = vmatpush1.msra.mxu0 0.0
    %294 = vmatprep.subr.mxu0 0.0
    %295 = vmatpush1.msra.mxu0 0.0
    %296 = vmatprep.subr.mxu0 0.0
    %297 = vmatpush1.msra.mxu0 0.0
    %298 = vmatprep.subr.mxu0 0.0
    %299 = vmatpush1.msra.mxu0 0.0
    %300 = vmatprep.subr.mxu0 0.0
    %301 = vmatpush1.msra.mxu0 0.0
    %302 = vmatprep.subr.mxu0 0.0
    %303 = vmatpush1.msra.mxu0 0.0
    %304 = vmatprep.subr.mxu0 0.0
    %305 = vmatpush1.msra.mxu0 0.0
    %306 = vmatprep.subr.mxu0 0.0
    %307 = vmatpush1.msra.mxu0 0.0
    %308 = vmatprep.subr.mxu0 0.0
    %309 = vmatpush1.msra.mxu0 0.0
    %310 = vmatprep.subr.mxu0 0.0
    %311 = vmatpush1.msra.mxu0 0.0
    %312 = vmatprep.subr.mxu0 0.0
    %313 = vmatpush1.msra.mxu0 0.0
    %314 = vmatprep.subr.mxu0 0.0
    %315 = vmatpush1.msra.mxu0 0.0
    %316 = vmatprep.subr.mxu0 0.0
    %317 = vmatpush1.msra.mxu0 0.0
    %318 = vmatprep.subr.mxu0 0.0
    %319 = vmatpush1.msra.mxu0 0.0
    %320 = vmatprep.subr.mxu0 0.0
    %321 = vmatpush1.msra.mxu0 0.0
    %322 = vmatprep.subr.mxu0 0.0
    %323 = vmatpush1.msra.mxu0 0.0
    %324 = vmatprep.subr.mxu0 0.0
    %325 = vmatpush1.msra.mxu0 0.0
    %326 = vmatprep.subr.mxu0 0.0
    %327 = vmatpush1.msra.mxu0 0.0
    %328 = vmatprep.subr.mxu0 0.0
    %329 = vmatpush1.msra.mxu0 0.0
    %330 = vmatprep.subr.mxu0 0.0
    %331 = vmatpush1.msra.mxu0 0.0
    %332 = vmatprep.subr.mxu0 0.0
    %333 = vmatpush1.msra.mxu0 0.0
    %334 = vmatprep.mubr.f32.mxu0 0.0
    %335 = vmatmul.mubr.f32.gmra.mrb[0].mxu0 %v265
    %v336 = vpop.f32.mrb[0].mxu0
    %v337 = vadd.f32 %v262, %v336
    %v338 = vpop.f32.mrb[0].mxu0
    %339 = vmatprep.mubr.f32.mxu0 0.0
    %340 = vmatmul.mubr.f32.gmra.mrb[0].mxu0 %v268
    %v341 = vpop.f32.mrb[0].mxu0
    %v342 = vadd.f32 %v262, %v341
    %v343 = vpop.f32.mrb[0].mxu0
    %344 = vdwg.mxu0
    %v346 = vsel %vm203, 0.0, 0
    %348 = vmatprep.subr.mxu0 0.0
    %349 = vmatpush1.msra.mxu0 %v253
    %350 = vmatprep.subr.mxu0 0.0
    %351 = vmatpush1.msra.mxu0 %v254
    %352 = vmatprep.subr.mxu0 0.0
    %353 = vmatpush1.msra.mxu0 %v255
    %354 = vmatprep.subr.mxu0 0.0
    %355 = vmatpush1.msra.mxu0 %v256
    %356 = vmatprep.subr.mxu0 0.0
    %357 = vmatpush1.msra.mxu0 0.0
    %358 = vmatprep.subr.mxu0 0.0
    %359 = vmatpush1.msra.mxu0 0.0
    %360 = vmatprep.subr.mxu0 0.0
    %361 = vmatpush1.msra.mxu0 0.0
    %362 = vmatprep.subr.mxu0 0.0
    %363 = vmatpush1.msra.mxu0 0.0
    %364 = vmatprep.subr.mxu0 0.0
    %365 = vmatpush1.msra.mxu0 0.0
    %366 = vmatprep.subr.mxu0 0.0
    %367 = vmatpush1.msra.mxu0 0.0
    %368 = vmatprep.subr.mxu0 0.0
    %369 = vmatpush1.msra.mxu0 0.0
    %370 = vmatprep.subr.mxu0 0.0
    %371 = vmatpush1.msra.mxu0 0.0
    %372 = vmatprep.subr.mxu0 0.0
    %373 = vmatpush1.msra.mxu0 0.0
    %374 = vmatprep.subr.mxu0 0.0
    %375 = vmatpush1.msra.mxu0 0.0
    %376 = vmatprep.subr.mxu0 0.0
    %377 = vmatpush1.msra.mxu0 0.0
    %378 = vmatprep.subr.mxu0 0.0
    %379 = vmatpush1.msra.mxu0 0.0
    %380 = vmatprep.subr.mxu0 0.0
    %381 = vmatpush1.msra.mxu0 0.0
    %382 = vmatprep.subr.mxu0 0.0
    %383 = vmatpush1.msra.mxu0 0.0
    %384 = vmatprep.subr.mxu0 0.0
    %385 = vmatpush1.msra.mxu0 0.0
    %386 = vmatprep.subr.mxu0 0.0
    %387 = vmatpush1.msra.mxu0 0.0
    %388 = vmatprep.subr.mxu0 0.0
    %389 = vmatpush1.msra.mxu0 0.0
    %390 = vmatprep.subr.mxu0 0.0
    %391 = vmatpush1.msra.mxu0 0.0
    %392 = vmatprep.subr.mxu0 0.0
    %393 = vmatpush1.msra.mxu0 0.0
    %394 = vmatprep.subr.mxu0 0.0
    %395 = vmatpush1.msra.mxu0 0.0
    %396 = vmatprep.subr.mxu0 0.0
    %397 = vmatpush1.msra.mxu0 0.0
    %398 = vmatprep.subr.mxu0 0.0
    %399 = vmatpush1.msra.mxu0 0.0
    %400 = vmatprep.subr.mxu0 0.0
    %401 = vmatpush1.msra.mxu0 0.0
    %402 = vmatprep.subr.mxu0 0.0
    %403 = vmatpush1.msra.mxu0 0.0
    %404 = vmatprep.subr.mxu0 0.0
    %405 = vmatpush1.msra.mxu0 0.0
    %406 = vmatprep.subr.mxu0 0.0
    %407 = vmatpush1.msra.mxu0 0.0
    %408 = vmatprep.subr.mxu0 0.0
    %409 = vmatpush1.msra.mxu0 0.0
    %410 = vmatprep.subr.mxu0 0.0
    %411 = vmatpush1.msra.mxu0 0.0
    %412 = vmatprep.mubr.f32.mxu0 0.0
    %413 = vmatmul.mubr.f32.gmra.mrb[0].mxu0 %v346
    %v414 = vpop.f32.mrb[0].mxu0
    %v415 = vadd.f32 0.0, %v414
    %v416 = vpop.f32.mrb[0].mxu0
    %417 = vdwg.mxu0
    %v418 = vadd.f32 %v337, %v415
    %v419 = vtanh.pop %v418
    %v421 = vsel %vm203, %v419, 0
    %423 = vmatprep.subr.mxu0 0.0
    %424 = vmatpush1.msra.mxu0 %v253
    %425 = vmatprep.subr.mxu0 0.0
    %426 = vmatpush1.msra.mxu0 %v254
    %427 = vmatprep.subr.mxu0 0.0
    %428 = vmatpush1.msra.mxu0 %v255
    %429 = vmatprep.subr.mxu0 0.0
    %430 = vmatpush1.msra.mxu0 %v256
    %431 = vmatprep.subr.mxu0 0.0
    %432 = vmatpush1.msra.mxu0 0.0
    %433 = vmatprep.subr.mxu0 0.0
    %434 = vmatpush1.msra.mxu0 0.0
    %435 = vmatprep.subr.mxu0 0.0
    %436 = vmatpush1.msra.mxu0 0.0
    %437 = vmatprep.subr.mxu0 0.0
    %438 = vmatpush1.msra.mxu0 0.0
    %439 = vmatprep.subr.mxu0 0.0
    %440 = vmatpush1.msra.mxu0 0.0
    %441 = vmatprep.subr.mxu0 0.0
    %442 = vmatpush1.msra.mxu0 0.0
    %443 = vmatprep.subr.mxu0 0.0
    %444 = vmatpush1.msra.mxu0 0.0
    %445 = vmatprep.subr.mxu0 0.0
    %446 = vmatpush1.msra.mxu0 0.0
    %447 = vmatprep.subr.mxu0 0.0
    %448 = vmatpush1.msra.mxu0 0.0
    %449 = vmatprep.subr.mxu0 0.0
    %450 = vmatpush1.msra.mxu0 0.0
    %451 = vmatprep.subr.mxu0 0.0
    %452 = vmatpush1.msra.mxu0 0.0
    %453 = vmatprep.subr.mxu0 0.0
    %454 = vmatpush1.msra.mxu0 0.0
    %455 = vmatprep.subr.mxu0 0.0
    %456 = vmatpush1.msra.mxu0 0.0
    %457 = vmatprep.subr.mxu0 0.0
    %458 = vmatpush1.msra.mxu0 0.0
    %459 = vmatprep.subr.mxu0 0.0
    %460 = vmatpush1.msra.mxu0 0.0
    %461 = vmatprep.subr.mxu0 0.0
    %462 = vmatpush1.msra.mxu0 0.0
    %463 = vmatprep.subr.mxu0 0.0
    %464 = vmatpush1.msra.mxu0 0.0
    %465 = vmatprep.subr.mxu0 0.0
    %466 = vmatpush1.msra.mxu0 0.0
    %467 = vmatprep.subr.mxu0 0.0
    %468 = vmatpush1.msra.mxu0 0.0
    %469 = vmatprep.subr.mxu0 0.0
    %470 = vmatpush1.msra.mxu0 0.0
    %471 = vmatprep.subr.mxu0 0.0
    %472 = vmatpush1.msra.mxu0 0.0
    %473 = vmatprep.subr.mxu0 0.0
    %474 = vmatpush1.msra.mxu0 0.0
    %475 = vmatprep.subr.mxu0 0.0
    %476 = vmatpush1.msra.mxu0 0.0
    %477 = vmatprep.subr.mxu0 0.0
    %478 = vmatpush1.msra.mxu0 0.0
    %479 = vmatprep.subr.mxu0 0.0
    %480 = vmatpush1.msra.mxu0 0.0
    %481 = vmatprep.subr.mxu0 0.0
    %482 = vmatpush1.msra.mxu0 0.0
    %483 = vmatprep.subr.mxu0 0.0
    %484 = vmatpush1.msra.mxu0 0.0
    %485 = vmatprep.subr.mxu0 0.0
    %486 = vmatpush1.msra.mxu0 0.0
    %487 = vmatprep.mubr.f32.mxu0 0.0
    %488 = vmatmul.mubr.f32.gmra.mrb[0].mxu0 %v421
    %v489 = vpop.f32.mrb[0].mxu0
    %v490 = vadd.f32 0.0, %v489
    %v491 = vpop.f32.mrb[0].mxu0
    %492 = vdwg.mxu0
    %v494 = vrot.slane %v490, 6
    %v496 = vadd.f32 %v337, %v494
    %v497 = vtanh.pop %v496
    %v499 = vrot.slane %v497, 2
    %v500 = vsel %vm203, %v499, 0
    %502 = vmatprep.subr.mxu0 0.0
    %503 = vmatpush1.msra.mxu0 %v253
    %504 = vmatprep.subr.mxu0 0.0
    %505 = vmatpush1.msra.mxu0 %v254
    %506 = vmatprep.subr.mxu0 0.0
    %507 = vmatpush1.msra.mxu0 %v255
    %508 = vmatprep.subr.mxu0 0.0
    %509 = vmatpush1.msra.mxu0 %v256
    %510 = vmatprep.subr.mxu0 0.0
    %511 = vmatpush1.msra.mxu0 0.0
    %512 = vmatprep.subr.mxu0 0.0
    %513 = vmatpush1.msra.mxu0 0.0
    %514 = vmatprep.subr.mxu0 0.0
    %515 = vmatpush1.msra.mxu0 0.0
    %516 = vmatprep.subr.mxu0 0.0
    %517 = vmatpush1.msra.mxu0 0.0
    %518 = vmatprep.subr.mxu0 0.0
    %519 = vmatpush1.msra.mxu0 0.0
    %520 = vmatprep.subr.mxu0 0.0
    %521 = vmatpush1.msra.mxu0 0.0
    %522 = vmatprep.subr.mxu0 0.0
    %523 = vmatpush1.msra.mxu0 0.0
    %524 = vmatprep.subr.mxu0 0.0
    %525 = vmatpush1.msra.mxu0 0.0
    %526 = vmatprep.subr.mxu0 0.0
    %527 = vmatpush1.msra.mxu0 0.0
    %528 = vmatprep.subr.mxu0 0.0
    %529 = vmatpush1.msra.mxu0 0.0
    %530 = vmatprep.subr.mxu0 0.0
    %531 = vmatpush1.msra.mxu0 0.0
    %532 = vmatprep.subr.mxu0 0.0
    %533 = vmatpush1.msra.mxu0 0.0
    %534 = vmatprep.subr.mxu0 0.0
    %535 = vmatpush1.msra.mxu0 0.0
    %536 = vmatprep.subr.mxu0 0.0
    %537 = vmatpush1.msra.mxu0 0.0
    %538 = vmatprep.subr.mxu0 0.0
    %539 = vmatpush1.msra.mxu0 0.0
    %540 = vmatprep.subr.mxu0 0.0
    %541 = vmatpush1.msra.mxu0 0.0
    %542 = vmatprep.subr.mxu0 0.0
    %543 = vmatpush1.msra.mxu0 0.0
    %544 = vmatprep.subr.mxu0 0.0
    %545 = vmatpush1.msra.mxu0 0.0
    %546 = vmatprep.subr.mxu0 0.0
    %547 = vmatpush1.msra.mxu0 0.0
    %548 = vmatprep.subr.mxu0 0.0
    %549 = vmatpush1.msra.mxu0 0.0
    %550 = vmatprep.subr.mxu0 0.0
    %551 = vmatpush1.msra.mxu0 0.0
    %552 = vmatprep.subr.mxu0 0.0
    %553 = vmatpush1.msra.mxu0 0.0
    %554 = vmatprep.subr.mxu0 0.0
    %555 = vmatpush1.msra.mxu0 0.0
    %556 = vmatprep.subr.mxu0 0.0
    %557 = vmatpush1.msra.mxu0 0.0
    %558 = vmatprep.subr.mxu0 0.0
    %559 = vmatpush1.msra.mxu0 0.0
    %560 = vmatprep.subr.mxu0 0.0
    %561 = vmatpush1.msra.mxu0 0.0
    %562 = vmatprep.subr.mxu0 0.0
    %563 = vmatpush1.msra.mxu0 0.0
    %564 = vmatprep.subr.mxu0 0.0
    %565 = vmatpush1.msra.mxu0 0.0
    %566 = vmatprep.mubr.f32.mxu0 0.0
    %567 = vmatmul.mubr.f32.gmra.mrb[0].mxu0 %v500
    %v568 = vpop.f32.mrb[0].mxu0
    %v569 = vadd.f32 0.0, %v568
    %v570 = vpop.f32.mrb[0].mxu0
    %571 = vdwg.mxu0
    %v573 = vrot.slane %v569, 4
    %v575 = vadd.f32 %v337, %v573
    %v576 = vtanh.pop %v575
    %v578 = vrot.slane %v576, 4
    %v579 = vsel %vm203, %v578, 0
    %581 = vmatprep.subr.mxu0 0.0
    %582 = vmatpush1.msra.mxu0 %v253
    %583 = vmatprep.subr.mxu0 0.0
    %584 = vmatpush1.msra.mxu0 %v254
    %585 = vmatprep.subr.mxu0 0.0
    %586 = vmatpush1.msra.mxu0 %v255
    %587 = vmatprep.subr.mxu0 0.0
    %588 = vmatpush1.msra.mxu0 %v256
    %589 = vmatprep.subr.mxu0 0.0
    %590 = vmatpush1.msra.mxu0 0.0
    %591 = vmatprep.subr.mxu0 0.0
    %592 = vmatpush1.msra.mxu0 0.0
    %593 = vmatprep.subr.mxu0 0.0
    %594 = vmatpush1.msra.mxu0 0.0
    %595 = vmatprep.subr.mxu0 0.0
    %596 = vmatpush1.msra.mxu0 0.0
    %597 = vmatprep.subr.mxu0 0.0
    %598 = vmatpush1.msra.mxu0 0.0
    %599 = vmatprep.subr.mxu0 0.0
    %600 = vmatpush1.msra.mxu0 0.0
    %601 = vmatprep.subr.mxu0 0.0
    %602 = vmatpush1.msra.mxu0 0.0
    %603 = vmatprep.subr.mxu0 0.0
    %604 = vmatpush1.msra.mxu0 0.0
    %605 = vmatprep.subr.mxu0 0.0
    %606 = vmatpush1.msra.mxu0 0.0
    %607 = vmatprep.subr.mxu0 0.0
    %608 = vmatpush1.msra.mxu0 0.0
    %609 = vmatprep.subr.mxu0 0.0
    %610 = vmatpush1.msra.mxu0 0.0
    %611 = vmatprep.subr.mxu0 0.0
    %612 = vmatpush1.msra.mxu0 0.0
    %613 = vmatprep.subr.mxu0 0.0
    %614 = vmatpush1.msra.mxu0 0.0
    %615 = vmatprep.subr.mxu0 0.0
    %616 = vmatpush1.msra.mxu0 0.0
    %617 = vmatprep.subr.mxu0 0.0
    %618 = vmatpush1.msra.mxu0 0.0
    %619 = vmatprep.subr.mxu0 0.0
    %620 = vmatpush1.msra.mxu0 0.0
    %621 = vmatprep.subr.mxu0 0.0
    %622 = vmatpush1.msra.mxu0 0.0
    %623 = vmatprep.subr.mxu0 0.0
    %624 = vmatpush1.msra.mxu0 0.0
    %625 = vmatprep.subr.mxu0 0.0
    %626 = vmatpush1.msra.mxu0 0.0
    %627 = vmatprep.subr.mxu0 0.0
    %628 = vmatpush1.msra.mxu0 0.0
    %629 = vmatprep.subr.mxu0 0.0
    %630 = vmatpush1.msra.mxu0 0.0
    %631 = vmatprep.subr.mxu0 0.0
    %632 = vmatpush1.msra.mxu0 0.0
    %633 = vmatprep.subr.mxu0 0.0
    %634 = vmatpush1.msra.mxu0 0.0
    %635 = vmatprep.subr.mxu0 0.0
    %636 = vmatpush1.msra.mxu0 0.0
    %637 = vmatprep.subr.mxu0 0.0
    %638 = vmatpush1.msra.mxu0 0.0
    %639 = vmatprep.subr.mxu0 0.0
    %640 = vmatpush1.msra.mxu0 0.0
    %641 = vmatprep.subr.mxu0 0.0
    %642 = vmatpush1.msra.mxu0 0.0
    %643 = vmatprep.subr.mxu0 0.0
    %644 = vmatpush1.msra.mxu0 0.0
    %645 = vmatprep.mubr.f32.mxu0 0.0
    %646 = vmatmul.mubr.f32.gmra.mrb[0].mxu0 %v579
    %v647 = vpop.f32.mrb[0].mxu0
    %v648 = vadd.f32 0.0, %v647
    %v649 = vpop.f32.mrb[0].mxu0
    %650 = vdwg.mxu0
    %v652 = vrot.slane %v648, 2
    %v654 = vadd.f32 %v337, %v652
    %v655 = vtanh.pop %v654
    %v657 = vrot.slane %v655, 6
    %v658 = vsel %vm203, %v657, 0
    %660 = vmatprep.subr.mxu0 0.0
    %661 = vmatpush1.msra.mxu0 %v253
    %662 = vmatprep.subr.mxu0 0.0
    %663 = vmatpush1.msra.mxu0 %v254
    %664 = vmatprep.subr.mxu0 0.0
    %665 = vmatpush1.msra.mxu0 %v255
    %666 = vmatprep.subr.mxu0 0.0
    %667 = vmatpush1.msra.mxu0 %v256
    %668 = vmatprep.subr.mxu0 0.0
    %669 = vmatpush1.msra.mxu0 0.0
    %670 = vmatprep.subr.mxu0 0.0
    %671 = vmatpush1.msra.mxu0 0.0
    %672 = vmatprep.subr.mxu0 0.0
    %673 = vmatpush1.msra.mxu0 0.0
    %674 = vmatprep.subr.mxu0 0.0
    %675 = vmatpush1.msra.mxu0 0.0
    %676 = vmatprep.subr.mxu0 0.0
    %677 = vmatpush1.msra.mxu0 0.0
    %678 = vmatprep.subr.mxu0 0.0
    %679 = vmatpush1.msra.mxu0 0.0
    %680 = vmatprep.subr.mxu0 0.0
    %681 = vmatpush1.msra.mxu0 0.0
    %682 = vmatprep.subr.mxu0 0.0
    %683 = vmatpush1.msra.mxu0 0.0
    %684 = vmatprep.subr.mxu0 0.0
    %685 = vmatpush1.msra.mxu0 0.0
    %686 = vmatprep.subr.mxu0 0.0
    %687 = vmatpush1.msra.mxu0 0.0
    %688 = vmatprep.subr.mxu0 0.0
    %689 = vmatpush1.msra.mxu0 0.0
    %690 = vmatprep.subr.mxu0 0.0
    %691 = vmatpush1.msra.mxu0 0.0
    %692 = vmatprep.subr.mxu0 0.0
    %693 = vmatpush1.msra.mxu0 0.0
    %694 = vmatprep.subr.mxu0 0.0
    %695 = vmatpush1.msra.mxu0 0.0
    %696 = vmatprep.subr.mxu0 0.0
    %697 = vmatpush1.msra.mxu0 0.0
    %698 = vmatprep.subr.mxu0 0.0
    %699 = vmatpush1.msra.mxu0 0.0
    %700 = vmatprep.subr.mxu0 0.0
    %701 = vmatpush1.msra.mxu0 0.0
    %702 = vmatprep.subr.mxu0 0.0
    %703 = vmatpush1.msra.mxu0 0.0
    %704 = vmatprep.subr.mxu0 0.0
    %705 = vmatpush1.msra.mxu0 0.0
    %706 = vmatprep.subr.mxu0 0.0
    %707 = vmatpush1.msra.mxu0 0.0
    %708 = vmatprep.subr.mxu0 0.0
    %709 = vmatpush1.msra.mxu0 0.0
    %710 = vmatprep.subr.mxu0 0.0
    %711 = vmatpush1.msra.mxu0 0.0
    %712 = vmatprep.subr.mxu0 0.0
    %713 = vmatpush1.msra.mxu0 0.0
    %714 = vmatprep.subr.mxu0 0.0
    %715 = vmatpush1.msra.mxu0 0.0
    %716 = vmatprep.subr.mxu0 0.0
    %717 = vmatpush1.msra.mxu0 0.0
    %718 = vmatprep.subr.mxu0 0.0
    %719 = vmatpush1.msra.mxu0 0.0
    %720 = vmatprep.subr.mxu0 0.0
    %721 = vmatpush1.msra.mxu0 0.0
    %722 = vmatprep.subr.mxu0 0.0
    %723 = vmatpush1.msra.mxu0 0.0
    %724 = vmatprep.mubr.f32.mxu0 0.0
    %725 = vmatmul.mubr.f32.gmra.mrb[0].mxu0 %v658
    %v726 = vpop.f32.mrb[0].mxu0
    %v727 = vadd.f32 0.0, %v726
    %v728 = vpop.f32.mrb[0].mxu0
    %729 = vdwg.mxu0
    %v730 = vadd.f32 %v342, %v727
    %v731 = vtanh.pop %v730
    %v733 = vsel %vm203, %v731, 0
    %735 = vmatprep.subr.mxu0 0.0
    %736 = vmatpush1.msra.mxu0 %v253
    %737 = vmatprep.subr.mxu0 0.0
    %738 = vmatpush1.msra.mxu0 %v254
    %739 = vmatprep.subr.mxu0 0.0
    %740 = vmatpush1.msra.mxu0 %v255
    %741 = vmatprep.subr.mxu0 0.0
    %742 = vmatpush1.msra.mxu0 %v256
    %743 = vmatprep.subr.mxu0 0.0
    %744 = vmatpush1.msra.mxu0 0.0
    %745 = vmatprep.subr.mxu0 0.0
    %746 = vmatpush1.msra.mxu0 0.0
    %747 = vmatprep.subr.mxu0 0.0
    %748 = vmatpush1.msra.mxu0 0.0
    %749 = vmatprep.subr.mxu0 0.0
    %750 = vmatpush1.msra.mxu0 0.0
    %751 = vmatprep.subr.mxu0 0.0
    %752 = vmatpush1.msra.mxu0 0.0
    %753 = vmatprep.subr.mxu0 0.0
    %754 = vmatpush1.msra.mxu0 0.0
    %755 = vmatprep.subr.mxu0 0.0
    %756 = vmatpush1.msra.mxu0 0.0
    %757 = vmatprep.subr.mxu0 0.0
    %758 = vmatpush1.msra.mxu0 0.0
    %759 = vmatprep.subr.mxu0 0.0
    %760 = vmatpush1.msra.mxu0 0.0
    %761 = vmatprep.subr.mxu0 0.0
    %762 = vmatpush1.msra.mxu0 0.0
    %763 = vmatprep.subr.mxu0 0.0
    %764 = vmatpush1.msra.mxu0 0.0
    %765 = vmatprep.subr.mxu0 0.0
    %766 = vmatpush1.msra.mxu0 0.0
    %767 = vmatprep.subr.mxu0 0.0
    %768 = vmatpush1.msra.mxu0 0.0
    %769 = vmatprep.subr.mxu0 0.0
    %770 = vmatpush1.msra.mxu0 0.0
    %771 = vmatprep.subr.mxu0 0.0
    %772 = vmatpush1.msra.mxu0 0.0
    %773 = vmatprep.subr.mxu0 0.0
    %774 = vmatpush1.msra.mxu0 0.0
    %775 = vmatprep.subr.mxu0 0.0
    %776 = vmatpush1.msra.mxu0 0.0
    %777 = vmatprep.subr.mxu0 0.0
    %778 = vmatpush1.msra.mxu0 0.0
    %779 = vmatprep.subr.mxu0 0.0
    %780 = vmatpush1.msra.mxu0 0.0
    %781 = vmatprep.subr.mxu0 0.0
    %782 = vmatpush1.msra.mxu0 0.0
    %783 = vmatprep.subr.mxu0 0.0
    %784 = vmatpush1.msra.mxu0 0.0
    %785 = vmatprep.subr.mxu0 0.0
    %786 = vmatpush1.msra.mxu0 0.0
    %787 = vmatprep.subr.mxu0 0.0
    %788 = vmatpush1.msra.mxu0 0.0
    %789 = vmatprep.subr.mxu0 0.0
    %790 = vmatpush1.msra.mxu0 0.0
    %791 = vmatprep.subr.mxu0 0.0
    %792 = vmatpush1.msra.mxu0 0.0
    %793 = vmatprep.subr.mxu0 0.0
    %794 = vmatpush1.msra.mxu0 0.0
    %795 = vmatprep.subr.mxu0 0.0
    %796 = vmatpush1.msra.mxu0 0.0
    %797 = vmatprep.subr.mxu0 0.0
    %798 = vmatpush1.msra.mxu0 0.0
    %799 = vmatprep.mubr.f32.mxu0 0.0
    %800 = vmatmul.mubr.f32.gmra.mrb[0].mxu0 %v733
    %v801 = vpop.f32.mrb[0].mxu0
    %v802 = vadd.f32 0.0, %v801
    %v803 = vpop.f32.mrb[0].mxu0
    %804 = vdwg.mxu0
    %v806 = vrot.slane %v802, 6
    %v808 = vadd.f32 %v342, %v806
    %v809 = vtanh.pop %v808
    %v811 = vrot.slane %v809, 2
    %v812 = vsel %vm203, %v811, 0
    %814 = vmatprep.subr.mxu0 0.0
    %815 = vmatpush1.msra.mxu0 %v253
    %816 = vmatprep.subr.mxu0 0.0
    %817 = vmatpush1.msra.mxu0 %v254
    %818 = vmatprep.subr.mxu0 0.0
    %819 = vmatpush1.msra.mxu0 %v255
    %820 = vmatprep.subr.mxu0 0.0
    %821 = vmatpush1.msra.mxu0 %v256
    %822 = vmatprep.subr.mxu0 0.0
    %823 = vmatpush1.msra.mxu0 0.0
    %824 = vmatprep.subr.mxu0 0.0
    %825 = vmatpush1.msra.mxu0 0.0
    %826 = vmatprep.subr.mxu0 0.0
    %827 = vmatpush1.msra.mxu0 0.0
    %828 = vmatprep.subr.mxu0 0.0
    %829 = vmatpush1.msra.mxu0 0.0
    %830 = vmatprep.subr.mxu0 0.0
    %831 = vmatpush1.msra.mxu0 0.0
    %832 = vmatprep.subr.mxu0 0.0
    %833 = vmatpush1.msra.mxu0 0.0
    %834 = vmatprep.subr.mxu0 0.0
    %835 = vmatpush1.msra.mxu0 0.0
    %836 = vmatprep.subr.mxu0 0.0
    %837 = vmatpush1.msra.mxu0 0.0
    %838 = vmatprep.subr.mxu0 0.0
    %839 = vmatpush1.msra.mxu0 0.0
    %840 = vmatprep.subr.mxu0 0.0
    %841 = vmatpush1.msra.mxu0 0.0
    %842 = vmatprep.subr.mxu0 0.0
    %843 = vmatpush1.msra.mxu0 0.0
    %844 = vmatprep.subr.mxu0 0.0
    %845 = vmatpush1.msra.mxu0 0.0
    %846 = vmatprep.subr.mxu0 0.0
    %847 = vmatpush1.msra.mxu0 0.0
    %848 = vmatprep.subr.mxu0 0.0
    %849 = vmatpush1.msra.mxu0 0.0
    %850 = vmatprep.subr.mxu0 0.0
    %851 = vmatpush1.msra.mxu0 0.0
    %852 = vmatprep.subr.mxu0 0.0
    %853 = vmatpush1.msra.mxu0 0.0
    %854 = vmatprep.subr.mxu0 0.0
    %855 = vmatpush1.msra.mxu0 0.0
    %856 = vmatprep.subr.mxu0 0.0
    %857 = vmatpush1.msra.mxu0 0.0
    %858 = vmatprep.subr.mxu0 0.0
    %859 = vmatpush1.msra.mxu0 0.0
    %860 = vmatprep.subr.mxu0 0.0
    %861 = vmatpush1.msra.mxu0 0.0
    %862 = vmatprep.subr.mxu0 0.0
    %863 = vmatpush1.msra.mxu0 0.0
    %864 = vmatprep.subr.mxu0 0.0
    %865 = vmatpush1.msra.mxu0 0.0
    %866 = vmatprep.subr.mxu0 0.0
    %867 = vmatpush1.msra.mxu0 0.0
    %868 = vmatprep.subr.mxu0 0.0
    %869 = vmatpush1.msra.mxu0 0.0
    %870 = vmatprep.subr.mxu0 0.0
    %871 = vmatpush1.msra.mxu0 0.0
    %872 = vmatprep.subr.mxu0 0.0
    %873 = vmatpush1.msra.mxu0 0.0
    %874 = vmatprep.subr.mxu0 0.0
    %875 = vmatpush1.msra.mxu0 0.0
    %876 = vmatprep.subr.mxu0 0.0
    %877 = vmatpush1.msra.mxu0 0.0
    %878 = vmatprep.mubr.f32.mxu0 0.0
    %879 = vmatmul.mubr.f32.gmra.mrb[0].mxu0 %v812
    %v880 = vpop.f32.mrb[0].mxu0
    %v881 = vadd.f32 0.0, %v880
    %v882 = vpop.f32.mrb[0].mxu0
    %883 = vdwg.mxu0
    %v885 = vrot.slane %v881, 4
    %v887 = vadd.f32 %v342, %v885
    %v888 = vtanh.pop %v887
    %v890 = vrot.slane %v888, 4
    %v891 = vsel %vm203, %v890, 0
    %893 = vmatprep.subr.mxu0 0.0
    %894 = vmatpush1.msra.mxu0 %v253
    %895 = vmatprep.subr.mxu0 0.0
    %896 = vmatpush1.msra.mxu0 %v254
    %897 = vmatprep.subr.mxu0 0.0
    %898 = vmatpush1.msra.mxu0 %v255
    %899 = vmatprep.subr.mxu0 0.0
    %900 = vmatpush1.msra.mxu0 %v256
    %901 = vmatprep.subr.mxu0 0.0
    %902 = vmatpush1.msra.mxu0 0.0
    %903 = vmatprep.subr.mxu0 0.0
    %904 = vmatpush1.msra.mxu0 0.0
    %905 = vmatprep.subr.mxu0 0.0
    %906 = vmatpush1.msra.mxu0 0.0
    %907 = vmatprep.subr.mxu0 0.0
    %908 = vmatpush1.msra.mxu0 0.0
    %909 = vmatprep.subr.mxu0 0.0
    %910 = vmatpush1.msra.mxu0 0.0
    %911 = vmatprep.subr.mxu0 0.0
    %912 = vmatpush1.msra.mxu0 0.0
    %913 = vmatprep.subr.mxu0 0.0
    %914 = vmatpush1.msra.mxu0 0.0
    %915 = vmatprep.subr.mxu0 0.0
    %916 = vmatpush1.msra.mxu0 0.0
    %917 = vmatprep.subr.mxu0 0.0
    %918 = vmatpush1.msra.mxu0 0.0
    %919 = vmatprep.subr.mxu0 0.0
    %920 = vmatpush1.msra.mxu0 0.0
    %921 = vmatprep.subr.mxu0 0.0
    %922 = vmatpush1.msra.mxu0 0.0
    %923 = vmatprep.subr.mxu0 0.0
    %924 = vmatpush1.msra.mxu0 0.0
    %925 = vmatprep.subr.mxu0 0.0
    %926 = vmatpush1.msra.mxu0 0.0
    %927 = vmatprep.subr.mxu0 0.0
    %928 = vmatpush1.msra.mxu0 0.0
    %929 = vmatprep.subr.mxu0 0.0
    %930 = vmatpush1.msra.mxu0 0.0
    %931 = vmatprep.subr.mxu0 0.0
    %932 = vmatpush1.msra.mxu0 0.0
    %933 = vmatprep.subr.mxu0 0.0
    %934 = vmatpush1.msra.mxu0 0.0
    %935 = vmatprep.subr.mxu0 0.0
    %936 = vmatpush1.msra.mxu0 0.0
    %937 = vmatprep.subr.mxu0 0.0
    %938 = vmatpush1.msra.mxu0 0.0
    %939 = vmatprep.subr.mxu0 0.0
    %940 = vmatpush1.msra.mxu0 0.0
    %941 = vmatprep.subr.mxu0 0.0
    %942 = vmatpush1.msra.mxu0 0.0
    %943 = vmatprep.subr.mxu0 0.0
    %944 = vmatpush1.msra.mxu0 0.0
    %945 = vmatprep.subr.mxu0 0.0
    %946 = vmatpush1.msra.mxu0 0.0
    %947 = vmatprep.subr.mxu0 0.0
    %948 = vmatpush1.msra.mxu0 0.0
    %949 = vmatprep.subr.mxu0 0.0
    %950 = vmatpush1.msra.mxu0 0.0
    %951 = vmatprep.subr.mxu0 0.0
    %952 = vmatpush1.msra.mxu0 0.0
    %953 = vmatprep.subr.mxu0 0.0
    %954 = vmatpush1.msra.mxu0 0.0
    %955 = vmatprep.subr.mxu0 0.0
    %956 = vmatpush1.msra.mxu0 0.0
    %957 = vmatprep.mubr.f32.mxu0 0.0
    %958 = vmatmul.mubr.f32.gmra.mrb[0].mxu0 %v891
    %v959 = vpop.f32.mrb[0].mxu0
    %v960 = vadd.f32 0.0, %v959
    %v961 = vpop.f32.mrb[0].mxu0
    %962 = vdwg.mxu0
    %v964 = vrot.slane %v960, 2
    %v966 = vadd.f32 %v342, %v964
    %v967 = vtanh.pop %v966
    %vm968 = vcmask 261126
    %969 = vst.msk [vmem:[#allocation12 - $0x6] sm:$0xc0] %vm968, %v967
    %vm970 = vcmask 1041408
    %v971 = vsel %vm970, %v419, %v497
    %vm972 = vcmask 1043456
    %v973 = vsel %vm972, %v971, %v576
    %vm974 = vcmask 1045504
    %v975 = vsel %vm974, %v973, %v655
    %v976 = vsel %vm970, %v731, %v809
    %v977 = vsel %vm972, %v976, %v888
    %v978 = vsel %vm974, %v977, %v967
    %v979 = vld [vmem:[#allocation8] sm:$0xff]
    %v980 = vld [vmem:[#allocation8 + $0x8] sm:$0xff]
    %v981 = vld [vmem:[#allocation8 + $0x10] sm:$0xff]
    %v982 = vld [vmem:[#allocation8 + $0x18] sm:$0xff]
    %s983 = scalar_lea.vmem %s6, 32
    %v984 = vld [vmem:[%s983] sm:$0xff]
    %v985 = vld [vmem:[%s983 + $0x8] sm:$0xff]
    %v986 = vld [vmem:[%s983 + $0x10] sm:$0xff]
    %v987 = vld [vmem:[%s983 + $0x18] sm:$0xff]
    %s988 = scalar_lea.vmem [#allocation10], 1
    %v989 = vld [vmem:[%s988] sm:$0x1]
    %v991 = vlaneseq
    %v992 = vshrl.u32 %v991, 7
    %v993 = vsub.s32 0, %v992
    %v994 = vrot.slane %v989, %v993
    %v997 = vsel %vm203, %v975, 0
    %v1000 = vsel %vm203, %v978, 0
    %1002 = vmatprep.subr.mxu0 0.0
    %1003 = vmatpush1.msra.mxu0 %v979
    %1004 = vmatprep.subr.mxu0 0.0
    %1005 = vmatpush1.msra.mxu0 %v980
    %1006 = vmatprep.subr.mxu0 0.0
    %1007 = vmatpush1.msra.mxu0 %v981
    %1008 = vmatprep.subr.mxu0 0.0
    %1009 = vmatpush1.msra.mxu0 %v982
    %1010 = vmatprep.subr.mxu0 0.0
    %1011 = vmatpush1.msra.mxu0 0.0
    %1012 = vmatprep.subr.mxu0 0.0
    %1013 = vmatpush1.msra.mxu0 0.0
    %1014 = vmatprep.subr.mxu0 0.0
    %1015 = vmatpush1.msra.mxu0 0.0
    %1016 = vmatprep.subr.mxu0 0.0
    %1017 = vmatpush1.msra.mxu0 0.0
    %1018 = vmatprep.subr.mxu0 0.0
    %1019 = vmatpush1.msra.mxu0 0.0
    %1020 = vmatprep.subr.mxu0 0.0
    %1021 = vmatpush1.msra.mxu0 0.0
    %1022 = vmatprep.subr.mxu0 0.0
    %1023 = vmatpush1.msra.mxu0 0.0
    %1024 = vmatprep.subr.mxu0 0.0
    %1025 = vmatpush1.msra.mxu0 0.0
    %1026 = vmatprep.subr.mxu0 0.0
    %1027 = vmatpush1.msra.mxu0 0.0
    %1028 = vmatprep.subr.mxu0 0.0
    %1029 = vmatpush1.msra.mxu0 0.0
    %1030 = vmatprep.subr.mxu0 0.0
    %1031 = vmatpush1.msra.mxu0 0.0
    %1032 = vmatprep.subr.mxu0 0.0
    %1033 = vmatpush1.msra.mxu0 0.0
    %1034 = vmatprep.subr.mxu0 0.0
    %1035 = vmatpush1.msra.mxu0 0.0
    %1036 = vmatprep.subr.mxu0 0.0
    %1037 = vmatpush1.msra.mxu0 0.0
    %1038 = vmatprep.subr.mxu0 0.0
    %1039 = vmatpush1.msra.mxu0 0.0
    %1040 = vmatprep.subr.mxu0 0.0
    %1041 = vmatpush1.msra.mxu0 0.0
    %1042 = vmatprep.subr.mxu0 0.0
    %1043 = vmatpush1.msra.mxu0 0.0
    %1044 = vmatprep.subr.mxu0 0.0
    %1045 = vmatpush1.msra.mxu0 0.0
    %1046 = vmatprep.subr.mxu0 0.0
    %1047 = vmatpush1.msra.mxu0 0.0
    %1048 = vmatprep.subr.mxu0 0.0
    %1049 = vmatpush1.msra.mxu0 0.0
    %1050 = vmatprep.subr.mxu0 0.0
    %1051 = vmatpush1.msra.mxu0 0.0
    %1052 = vmatprep.subr.mxu0 0.0
    %1053 = vmatpush1.msra.mxu0 0.0
    %1054 = vmatprep.subr.mxu0 0.0
    %1055 = vmatpush1.msra.mxu0 0.0
    %1056 = vmatprep.subr.mxu0 0.0
    %1057 = vmatpush1.msra.mxu0 0.0
    %1058 = vmatprep.subr.mxu0 0.0
    %1059 = vmatpush1.msra.mxu0 0.0
    %1060 = vmatprep.subr.mxu0 0.0
    %1061 = vmatpush1.msra.mxu0 0.0
    %1062 = vmatprep.subr.mxu0 0.0
    %1063 = vmatpush1.msra.mxu0 0.0
    %1064 = vmatprep.subr.mxu0 0.0
    %1065 = vmatpush1.msra.mxu0 0.0
    %1066 = vmatprep.mubr.f32.mxu0 0.0
    %1067 = vmatmul.mubr.f32.gmra.mrb[0].mxu0 %v997
    %v1068 = vpop.f32.mrb[0].mxu0
    %v1069 = vadd.f32 %v994, %v1068
    %v1070 = vpop.f32.mrb[0].mxu0
    %1071 = vmatprep.mubr.f32.mxu0 0.0
    %1072 = vmatmul.mubr.f32.gmra.mrb[0].mxu0 %v1000
    %v1073 = vpop.f32.mrb[0].mxu0
    %v1074 = vadd.f32 %v994, %v1073
    %v1075 = vpop.f32.mrb[0].mxu0
    %1076 = vdwg.mxu0
    %1077 = vmatprep.subr.mxu0 0.0
    %1078 = vmatpush1.msra.mxu0 %v984
    %1079 = vmatprep.subr.mxu0 0.0
    %1080 = vmatpush1.msra.mxu0 %v985
    %1081 = vmatprep.subr.mxu0 0.0
    %1082 = vmatpush1.msra.mxu0 %v986
    %1083 = vmatprep.subr.mxu0 0.0
    %1084 = vmatpush1.msra.mxu0 %v987
    %1085 = vmatprep.subr.mxu0 0.0
    %1086 = vmatpush1.msra.mxu0 0.0
    %1087 = vmatprep.subr.mxu0 0.0
    %1088 = vmatpush1.msra.mxu0 0.0
    %1089 = vmatprep.subr.mxu0 0.0
    %1090 = vmatpush1.msra.mxu0 0.0
    %1091 = vmatprep.subr.mxu0 0.0
    %1092 = vmatpush1.msra.mxu0 0.0
    %1093 = vmatprep.subr.mxu0 0.0
    %1094 = vmatpush1.msra.mxu0 0.0
    %1095 = vmatprep.subr.mxu0 0.0
    %1096 = vmatpush1.msra.mxu0 0.0
    %1097 = vmatprep.subr.mxu0 0.0
    %1098 = vmatpush1.msra.mxu0 0.0
    %1099 = vmatprep.subr.mxu0 0.0
    %1100 = vmatpush1.msra.mxu0 0.0
    %1101 = vmatprep.subr.mxu0 0.0
    %1102 = vmatpush1.msra.mxu0 0.0
    %1103 = vmatprep.subr.mxu0 0.0
    %1104 = vmatpush1.msra.mxu0 0.0
    %1105 = vmatprep.subr.mxu0 0.0
    %1106 = vmatpush1.msra.mxu0 0.0
    %1107 = vmatprep.subr.mxu0 0.0
    %1108 = vmatpush1.msra.mxu0 0.0
    %1109 = vmatprep.subr.mxu0 0.0
    %1110 = vmatpush1.msra.mxu0 0.0
    %1111 = vmatprep.subr.mxu0 0.0
    %1112 = vmatpush1.msra.mxu0 0.0
    %1113 = vmatprep.subr.mxu0 0.0
    %1114 = vmatpush1.msra.mxu0 0.0
    %1115 = vmatprep.subr.mxu0 0.0
    %1116 = vmatpush1.msra.mxu0 0.0
    %1117 = vmatprep.subr.mxu0 0.0
    %1118 = vmatpush1.msra.mxu0 0.0
    %1119 = vmatprep.subr.mxu0 0.0
    %1120 = vmatpush1.msra.mxu0 0.0
    %1121 = vmatprep.subr.mxu0 0.0
    %1122 = vmatpush1.msra.mxu0 0.0
    %1123 = vmatprep.subr.mxu0 0.0
    %1124 = vmatpush1.msra.mxu0 0.0
    %1125 = vmatprep.subr.mxu0 0.0
    %1126 = vmatpush1.msra.mxu0 0.0
    %1127 = vmatprep.subr.mxu0 0.0
    %1128 = vmatpush1.msra.mxu0 0.0
    %1129 = vmatprep.subr.mxu0 0.0
    %1130 = vmatpush1.msra.mxu0 0.0
    %1131 = vmatprep.subr.mxu0 0.0
    %1132 = vmatpush1.msra.mxu0 0.0
    %1133 = vmatprep.subr.mxu0 0.0
    %1134 = vmatpush1.msra.mxu0 0.0
    %1135 = vmatprep.subr.mxu0 0.0
    %1136 = vmatpush1.msra.mxu0 0.0
    %1137 = vmatprep.subr.mxu0 0.0
    %1138 = vmatpush1.msra.mxu0 0.0
    %1139 = vmatprep.subr.mxu0 0.0
    %1140 = vmatpush1.msra.mxu0 0.0
    %1141 = vmatprep.mubr.f32.mxu0 0.0
    %1142 = vmatmul.mubr.f32.gmra.mrb[0].mxu0 %v346
    %v1143 = vpop.f32.mrb[0].mxu0
    %v1144 = vadd.f32 0.0, %v1143
    %v1145 = vpop.f32.mrb[0].mxu0
    %1146 = vdwg.mxu0
    %v1147 = vadd.f32 %v1069, %v1144
    %v1148 = vtanh.pop %v1147
    %v1150 = vsel %vm203, %v1148, 0
    %1152 = vmatprep.subr.mxu0 0.0
    %1153 = vmatpush1.msra.mxu0 %v984
    %1154 = vmatprep.subr.mxu0 0.0
    %1155 = vmatpush1.msra.mxu0 %v985
    %1156 = vmatprep.subr.mxu0 0.0
    %1157 = vmatpush1.msra.mxu0 %v986
    %1158 = vmatprep.subr.mxu0 0.0
    %1159 = vmatpush1.msra.mxu0 %v987
    %1160 = vmatprep.subr.mxu0 0.0
    %1161 = vmatpush1.msra.mxu0 0.0
    %1162 = vmatprep.subr.mxu0 0.0
    %1163 = vmatpush1.msra.mxu0 0.0
    %1164 = vmatprep.subr.mxu0 0.0
    %1165 = vmatpush1.msra.mxu0 0.0
    %1166 = vmatprep.subr.mxu0 0.0
    %1167 = vmatpush1.msra.mxu0 0.0
    %1168 = vmatprep.subr.mxu0 0.0
    %1169 = vmatpush1.msra.mxu0 0.0
    %1170 = vmatprep.subr.mxu0 0.0
    %1171 = vmatpush1.msra.mxu0 0.0
    %1172 = vmatprep.subr.mxu0 0.0
    %1173 = vmatpush1.msra.mxu0 0.0
    %1174 = vmatprep.subr.mxu0 0.0
    %1175 = vmatpush1.msra.mxu0 0.0
    %1176 = vmatprep.subr.mxu0 0.0
    %1177 = vmatpush1.msra.mxu0 0.0
    %1178 = vmatprep.subr.mxu0 0.0
    %1179 = vmatpush1.msra.mxu0 0.0
    %1180 = vmatprep.subr.mxu0 0.0
    %1181 = vmatpush1.msra.mxu0 0.0
    %1182 = vmatprep.subr.mxu0 0.0
    %1183 = vmatpush1.msra.mxu0 0.0
    %1184 = vmatprep.subr.mxu0 0.0
    %1185 = vmatpush1.msra.mxu0 0.0
    %1186 = vmatprep.subr.mxu0 0.0
    %1187 = vmatpush1.msra.mxu0 0.0
    %1188 = vmatprep.subr.mxu0 0.0
    %1189 = vmatpush1.msra.mxu0 0.0
    %1190 = vmatprep.subr.mxu0 0.0
    %1191 = vmatpush1.msra.mxu0 0.0
    %1192 = vmatprep.subr.mxu0 0.0
    %1193 = vmatpush1.msra.mxu0 0.0
    %1194 = vmatprep.subr.mxu0 0.0
    %1195 = vmatpush1.msra.mxu0 0.0
    %1196 = vmatprep.subr.mxu0 0.0
    %1197 = vmatpush1.msra.mxu0 0.0
    %1198 = vmatprep.subr.mxu0 0.0
    %1199 = vmatpush1.msra.mxu0 0.0
    %1200 = vmatprep.subr.mxu0 0.0
    %1201 = vmatpush1.msra.mxu0 0.0
    %1202 = vmatprep.subr.mxu0 0.0
    %1203 = vmatpush1.msra.mxu0 0.0
    %1204 = vmatprep.subr.mxu0 0.0
    %1205 = vmatpush1.msra.mxu0 0.0
    %1206 = vmatprep.subr.mxu0 0.0
    %1207 = vmatpush1.msra.mxu0 0.0
    %1208 = vmatprep.subr.mxu0 0.0
    %1209 = vmatpush1.msra.mxu0 0.0
    %1210 = vmatprep.subr.mxu0 0.0
    %1211 = vmatpush1.msra.mxu0 0.0
    %1212 = vmatprep.subr.mxu0 0.0
    %1213 = vmatpush1.msra.mxu0 0.0
    %1214 = vmatprep.subr.mxu0 0.0
    %1215 = vmatpush1.msra.mxu0 0.0
    %1216 = vmatprep.mubr.f32.mxu0 0.0
    %1217 = vmatmul.mubr.f32.gmra.mrb[0].mxu0 %v1150
    %v1218 = vpop.f32.mrb[0].mxu0
    %v1219 = vadd.f32 0.0, %v1218
    %v1220 = vpop.f32.mrb[0].mxu0
    %1221 = vdwg.mxu0
    %v1223 = vrot.slane %v1219, 6
    %v1225 = vadd.f32 %v1069, %v1223
    %v1226 = vtanh.pop %v1225
    %v1228 = vrot.slane %v1226, 2
    %v1229 = vsel %vm203, %v1228, 0
    %1231 = vmatprep.subr.mxu0 0.0
    %1232 = vmatpush1.msra.mxu0 %v984
    %1233 = vmatprep.subr.mxu0 0.0
    %1234 = vmatpush1.msra.mxu0 %v985
    %1235 = vmatprep.subr.mxu0 0.0
    %1236 = vmatpush1.msra.mxu0 %v986
    %1237 = vmatprep.subr.mxu0 0.0
    %1238 = vmatpush1.msra.mxu0 %v987
    %1239 = vmatprep.subr.mxu0 0.0
    %1240 = vmatpush1.msra.mxu0 0.0
    %1241 = vmatprep.subr.mxu0 0.0
    %1242 = vmatpush1.msra.mxu0 0.0
    %1243 = vmatprep.subr.mxu0 0.0
    %1244 = vmatpush1.msra.mxu0 0.0
    %1245 = vmatprep.subr.mxu0 0.0
    %1246 = vmatpush1.msra.mxu0 0.0
    %1247 = vmatprep.subr.mxu0 0.0
    %1248 = vmatpush1.msra.mxu0 0.0
    %1249 = vmatprep.subr.mxu0 0.0
    %1250 = vmatpush1.msra.mxu0 0.0
    %1251 = vmatprep.subr.mxu0 0.0
    %1252 = vmatpush1.msra.mxu0 0.0
    %1253 = vmatprep.subr.mxu0 0.0
    %1254 = vmatpush1.msra.mxu0 0.0
    %1255 = vmatprep.subr.mxu0 0.0
    %1256 = vmatpush1.msra.mxu0 0.0
    %1257 = vmatprep.subr.mxu0 0.0
    %1258 = vmatpush1.msra.mxu0 0.0
    %1259 = vmatprep.subr.mxu0 0.0
    %1260 = vmatpush1.msra.mxu0 0.0
    %1261 = vmatprep.subr.mxu0 0.0
    %1262 = vmatpush1.msra.mxu0 0.0
    %1263 = vmatprep.subr.mxu0 0.0
    %1264 = vmatpush1.msra.mxu0 0.0
    %1265 = vmatprep.subr.mxu0 0.0
    %1266 = vmatpush1.msra.mxu0 0.0
    %1267 = vmatprep.subr.mxu0 0.0
    %1268 = vmatpush1.msra.mxu0 0.0
    %1269 = vmatprep.subr.mxu0 0.0
    %1270 = vmatpush1.msra.mxu0 0.0
    %1271 = vmatprep.subr.mxu0 0.0
    %1272 = vmatpush1.msra.mxu0 0.0
    %1273 = vmatprep.subr.mxu0 0.0
    %1274 = vmatpush1.msra.mxu0 0.0
    %1275 = vmatprep.subr.mxu0 0.0
    %1276 = vmatpush1.msra.mxu0 0.0
    %1277 = vmatprep.subr.mxu0 0.0
    %1278 = vmatpush1.msra.mxu0 0.0
    %1279 = vmatprep.subr.mxu0 0.0
    %1280 = vmatpush1.msra.mxu0 0.0
    %1281 = vmatprep.subr.mxu0 0.0
    %1282 = vmatpush1.msra.mxu0 0.0
    %1283 = vmatprep.subr.mxu0 0.0
    %1284 = vmatpush1.msra.mxu0 0.0
    %1285 = vmatprep.subr.mxu0 0.0
    %1286 = vmatpush1.msra.mxu0 0.0
    %1287 = vmatprep.subr.mxu0 0.0
    %1288 = vmatpush1.msra.mxu0 0.0
    %1289 = vmatprep.subr.mxu0 0.0
    %1290 = vmatpush1.msra.mxu0 0.0
    %1291 = vmatprep.subr.mxu0 0.0
    %1292 = vmatpush1.msra.mxu0 0.0
    %1293 = vmatprep.subr.mxu0 0.0
    %1294 = vmatpush1.msra.mxu0 0.0
    %1295 = vmatprep.mubr.f32.mxu0 0.0
    %1296 = vmatmul.mubr.f32.gmra.mrb[0].mxu0 %v1229
    %v1297 = vpop.f32.mrb[0].mxu0
    %v1298 = vadd.f32 0.0, %v1297
    %v1299 = vpop.f32.mrb[0].mxu0
    %1300 = vdwg.mxu0
    %v1302 = vrot.slane %v1298, 4
    %v1304 = vadd.f32 %v1069, %v1302
    %v1305 = vtanh.pop %v1304
    %v1307 = vrot.slane %v1305, 4
    %v1308 = vsel %vm203, %v1307, 0
    %1310 = vmatprep.subr.mxu0 0.0
    %1311 = vmatpush1.msra.mxu0 %v984
    %1312 = vmatprep.subr.mxu0 0.0
    %1313 = vmatpush1.msra.mxu0 %v985
    %1314 = vmatprep.subr.mxu0 0.0
    %1315 = vmatpush1.msra.mxu0 %v986
    %1316 = vmatprep.subr.mxu0 0.0
    %1317 = vmatpush1.msra.mxu0 %v987
    %1318 = vmatprep.subr.mxu0 0.0
    %1319 = vmatpush1.msra.mxu0 0.0
    %1320 = vmatprep.subr.mxu0 0.0
    %1321 = vmatpush1.msra.mxu0 0.0
    %1322 = vmatprep.subr.mxu0 0.0
    %1323 = vmatpush1.msra.mxu0 0.0
    %1324 = vmatprep.subr.mxu0 0.0
    %1325 = vmatpush1.msra.mxu0 0.0
    %1326 = vmatprep.subr.mxu0 0.0
    %1327 = vmatpush1.msra.mxu0 0.0
    %1328 = vmatprep.subr.mxu0 0.0
    %1329 = vmatpush1.msra.mxu0 0.0
    %1330 = vmatprep.subr.mxu0 0.0
    %1331 = vmatpush1.msra.mxu0 0.0
    %1332 = vmatprep.subr.mxu0 0.0
    %1333 = vmatpush1.msra.mxu0 0.0
    %1334 = vmatprep.subr.mxu0 0.0
    %1335 = vmatpush1.msra.mxu0 0.0
    %1336 = vmatprep.subr.mxu0 0.0
    %1337 = vmatpush1.msra.mxu0 0.0
    %1338 = vmatprep.subr.mxu0 0.0
    %1339 = vmatpush1.msra.mxu0 0.0
    %1340 = vmatprep.subr.mxu0 0.0
    %1341 = vmatpush1.msra.mxu0 0.0
    %1342 = vmatprep.subr.mxu0 0.0
    %1343 = vmatpush1.msra.mxu0 0.0
    %1344 = vmatprep.subr.mxu0 0.0
    %1345 = vmatpush1.msra.mxu0 0.0
    %1346 = vmatprep.subr.mxu0 0.0
    %1347 = vmatpush1.msra.mxu0 0.0
    %1348 = vmatprep.subr.mxu0 0.0
    %1349 = vmatpush1.msra.mxu0 0.0
    %1350 = vmatprep.subr.mxu0 0.0
    %1351 = vmatpush1.msra.mxu0 0.0
    %1352 = vmatprep.subr.mxu0 0.0
    %1353 = vmatpush1.msra.mxu0 0.0
    %1354 = vmatprep.subr.mxu0 0.0
    %1355 = vmatpush1.msra.mxu0 0.0
    %1356 = vmatprep.subr.mxu0 0.0
    %1357 = vmatpush1.msra.mxu0 0.0
    %1358 = vmatprep.subr.mxu0 0.0
    %1359 = vmatpush1.msra.mxu0 0.0
    %1360 = vmatprep.subr.mxu0 0.0
    %1361 = vmatpush1.msra.mxu0 0.0
    %1362 = vmatprep.subr.mxu0 0.0
    %1363 = vmatpush1.msra.mxu0 0.0
    %1364 = vmatprep.subr.mxu0 0.0
    %1365 = vmatpush1.msra.mxu0 0.0
    %1366 = vmatprep.subr.mxu0 0.0
    %1367 = vmatpush1.msra.mxu0 0.0
    %1368 = vmatprep.subr.mxu0 0.0
    %1369 = vmatpush1.msra.mxu0 0.0
    %1370 = vmatprep.subr.mxu0 0.0
    %1371 = vmatpush1.msra.mxu0 0.0
    %1372 = vmatprep.subr.mxu0 0.0
    %1373 = vmatpush1.msra.mxu0 0.0
    %1374 = vmatprep.mubr.f32.mxu0 0.0
    %1375 = vmatmul.mubr.f32.gmra.mrb[0].mxu0 %v1308
    %v1376 = vpop.f32.mrb[0].mxu0
    %v1377 = vadd.f32 0.0, %v1376
    %v1378 = vpop.f32.mrb[0].mxu0
    %1379 = vdwg.mxu0
    %v1381 = vrot.slane %v1377, 2
    %v1383 = vadd.f32 %v1069, %v1381
    %v1384 = vtanh.pop %v1383
    %v1386 = vrot.slane %v1384, 6
    %v1387 = vsel %vm203, %v1386, 0
    %1389 = vmatprep.subr.mxu0 0.0
    %1390 = vmatpush1.msra.mxu0 %v984
    %1391 = vmatprep.subr.mxu0 0.0
    %1392 = vmatpush1.msra.mxu0 %v985
    %1393 = vmatprep.subr.mxu0 0.0
    %1394 = vmatpush1.msra.mxu0 %v986
    %1395 = vmatprep.subr.mxu0 0.0
    %1396 = vmatpush1.msra.mxu0 %v987
    %1397 = vmatprep.subr.mxu0 0.0
    %1398 = vmatpush1.msra.mxu0 0.0
    %1399 = vmatprep.subr.mxu0 0.0
    %1400 = vmatpush1.msra.mxu0 0.0
    %1401 = vmatprep.subr.mxu0 0.0
    %1402 = vmatpush1.msra.mxu0 0.0
    %1403 = vmatprep.subr.mxu0 0.0
    %1404 = vmatpush1.msra.mxu0 0.0
    %1405 = vmatprep.subr.mxu0 0.0
    %1406 = vmatpush1.msra.mxu0 0.0
    %1407 = vmatprep.subr.mxu0 0.0
    %1408 = vmatpush1.msra.mxu0 0.0
    %1409 = vmatprep.subr.mxu0 0.0
    %1410 = vmatpush1.msra.mxu0 0.0
    %1411 = vmatprep.subr.mxu0 0.0
    %1412 = vmatpush1.msra.mxu0 0.0
    %1413 = vmatprep.subr.mxu0 0.0
    %1414 = vmatpush1.msra.mxu0 0.0
    %1415 = vmatprep.subr.mxu0 0.0
    %1416 = vmatpush1.msra.mxu0 0.0
    %1417 = vmatprep.subr.mxu0 0.0
    %1418 = vmatpush1.msra.mxu0 0.0
    %1419 = vmatprep.subr.mxu0 0.0
    %1420 = vmatpush1.msra.mxu0 0.0
    %1421 = vmatprep.subr.mxu0 0.0
    %1422 = vmatpush1.msra.mxu0 0.0
    %1423 = vmatprep.subr.mxu0 0.0
    %1424 = vmatpush1.msra.mxu0 0.0
    %1425 = vmatprep.subr.mxu0 0.0
    %1426 = vmatpush1.msra.mxu0 0.0
    %1427 = vmatprep.subr.mxu0 0.0
    %1428 = vmatpush1.msra.mxu0 0.0
    %1429 = vmatprep.subr.mxu0 0.0
    %1430 = vmatpush1.msra.mxu0 0.0
    %1431 = vmatprep.subr.mxu0 0.0
    %1432 = vmatpush1.msra.mxu0 0.0
    %1433 = vmatprep.subr.mxu0 0.0
    %1434 = vmatpush1.msra.mxu0 0.0
    %1435 = vmatprep.subr.mxu0 0.0
    %1436 = vmatpush1.msra.mxu0 0.0
    %1437 = vmatprep.subr.mxu0 0.0
    %1438 = vmatpush1.msra.mxu0 0.0
    %1439 = vmatprep.subr.mxu0 0.0
    %1440 = vmatpush1.msra.mxu0 0.0
    %1441 = vmatprep.subr.mxu0 0.0
    %1442 = vmatpush1.msra.mxu0 0.0
    %1443 = vmatprep.subr.mxu0 0.0
    %1444 = vmatpush1.msra.mxu0 0.0
    %1445 = vmatprep.subr.mxu0 0.0
    %1446 = vmatpush1.msra.mxu0 0.0
    %1447 = vmatprep.subr.mxu0 0.0
    %1448 = vmatpush1.msra.mxu0 0.0
    %1449 = vmatprep.subr.mxu0 0.0
    %1450 = vmatpush1.msra.mxu0 0.0
    %1451 = vmatprep.subr.mxu0 0.0
    %1452 = vmatpush1.msra.mxu0 0.0
    %1453 = vmatprep.mubr.f32.mxu0 0.0
    %1454 = vmatmul.mubr.f32.gmra.mrb[0].mxu0 %v1387
    %v1455 = vpop.f32.mrb[0].mxu0
    %v1456 = vadd.f32 0.0, %v1455
    %v1457 = vpop.f32.mrb[0].mxu0
    %1458 = vdwg.mxu0
    %v1459 = vadd.f32 %v1074, %v1456
    %v1460 = vtanh.pop %v1459
    %v1462 = vsel %vm203, %v1460, 0
    %1464 = vmatprep.subr.mxu0 0.0
    %1465 = vmatpush1.msra.mxu0 %v984
    %1466 = vmatprep.subr.mxu0 0.0
    %1467 = vmatpush1.msra.mxu0 %v985
    %1468 = vmatprep.subr.mxu0 0.0
    %1469 = vmatpush1.msra.mxu0 %v986
    %1470 = vmatprep.subr.mxu0 0.0
    %1471 = vmatpush1.msra.mxu0 %v987
    %1472 = vmatprep.subr.mxu0 0.0
    %1473 = vmatpush1.msra.mxu0 0.0
    %1474 = vmatprep.subr.mxu0 0.0
    %1475 = vmatpush1.msra.mxu0 0.0
    %1476 = vmatprep.subr.mxu0 0.0
    %1477 = vmatpush1.msra.mxu0 0.0
    %1478 = vmatprep.subr.mxu0 0.0
    %1479 = vmatpush1.msra.mxu0 0.0
    %1480 = vmatprep.subr.mxu0 0.0
    %1481 = vmatpush1.msra.mxu0 0.0
    %1482 = vmatprep.subr.mxu0 0.0
    %1483 = vmatpush1.msra.mxu0 0.0
    %1484 = vmatprep.subr.mxu0 0.0
    %1485 = vmatpush1.msra.mxu0 0.0
    %1486 = vmatprep.subr.mxu0 0.0
    %1487 = vmatpush1.msra.mxu0 0.0
    %1488 = vmatprep.subr.mxu0 0.0
    %1489 = vmatpush1.msra.mxu0 0.0
    %1490 = vmatprep.subr.mxu0 0.0
    %1491 = vmatpush1.msra.mxu0 0.0
    %1492 = vmatprep.subr.mxu0 0.0
    %1493 = vmatpush1.msra.mxu0 0.0
    %1494 = vmatprep.subr.mxu0 0.0
    %1495 = vmatpush1.msra.mxu0 0.0
    %1496 = vmatprep.subr.mxu0 0.0
    %1497 = vmatpush1.msra.mxu0 0.0
    %1498 = vmatprep.subr.mxu0 0.0
    %1499 = vmatpush1.msra.mxu0 0.0
    %1500 = vmatprep.subr.mxu0 0.0
    %1501 = vmatpush1.msra.mxu0 0.0
    %1502 = vmatprep.subr.mxu0 0.0
    %1503 = vmatpush1.msra.mxu0 0.0
    %1504 = vmatprep.subr.mxu0 0.0
    %1505 = vmatpush1.msra.mxu0 0.0
    %1506 = vmatprep.subr.mxu0 0.0
    %1507 = vmatpush1.msra.mxu0 0.0
    %1508 = vmatprep.subr.mxu0 0.0
    %1509 = vmatpush1.msra.mxu0 0.0
    %1510 = vmatprep.subr.mxu0 0.0
    %1511 = vmatpush1.msra.mxu0 0.0
    %1512 = vmatprep.subr.mxu0 0.0
    %1513 = vmatpush1.msra.mxu0 0.0
    %1514 = vmatprep.subr.mxu0 0.0
    %1515 = vmatpush1.msra.mxu0 0.0
    %1516 = vmatprep.subr.mxu0 0.0
    %1517 = vmatpush1.msra.mxu0 0.0
    %1518 = vmatprep.subr.mxu0 0.0
    %1519 = vmatpush1.msra.mxu0 0.0
    %1520 = vmatprep.subr.mxu0 0.0
    %1521 = vmatpush1.msra.mxu0 0.0
    %1522 = vmatprep.subr.mxu0 0.0
    %1523 = vmatpush1.msra.mxu0 0.0
    %1524 = vmatprep.subr.mxu0 0.0
    %1525 = vmatpush1.msra.mxu0 0.0
    %1526 = vmatprep.subr.mxu0 0.0
    %1527 = vmatpush1.msra.mxu0 0.0
    %1528 = vmatprep.mubr.f32.mxu0 0.0
    %1529 = vmatmul.mubr.f32.gmra.mrb[0].mxu0 %v1462
    %v1530 = vpop.f32.mrb[0].mxu0
    %v1531 = vadd.f32 0.0, %v1530
    %v1532 = vpop.f32.mrb[0].mxu0
    %1533 = vdwg.mxu0
    %v1535 = vrot.slane %v1531, 6
    %v1537 = vadd.f32 %v1074, %v1535
    %v1538 = vtanh.pop %v1537
    %v1540 = vrot.slane %v1538, 2
    %v1541 = vsel %vm203, %v1540, 0
    %1543 = vmatprep.subr.mxu0 0.0
    %1544 = vmatpush1.msra.mxu0 %v984
    %1545 = vmatprep.subr.mxu0 0.0
    %1546 = vmatpush1.msra.mxu0 %v985
    %1547 = vmatprep.subr.mxu0 0.0
    %1548 = vmatpush1.msra.mxu0 %v986
    %1549 = vmatprep.subr.mxu0 0.0
    %1550 = vmatpush1.msra.mxu0 %v987
    %1551 = vmatprep.subr.mxu0 0.0
    %1552 = vmatpush1.msra.mxu0 0.0
    %1553 = vmatprep.subr.mxu0 0.0
    %1554 = vmatpush1.msra.mxu0 0.0
    %1555 = vmatprep.subr.mxu0 0.0
    %1556 = vmatpush1.msra.mxu0 0.0
    %1557 = vmatprep.subr.mxu0 0.0
    %1558 = vmatpush1.msra.mxu0 0.0
    %1559 = vmatprep.subr.mxu0 0.0
    %1560 = vmatpush1.msra.mxu0 0.0
    %1561 = vmatprep.subr.mxu0 0.0
    %1562 = vmatpush1.msra.mxu0 0.0
    %1563 = vmatprep.subr.mxu0 0.0
    %1564 = vmatpush1.msra.mxu0 0.0
    %1565 = vmatprep.subr.mxu0 0.0
    %1566 = vmatpush1.msra.mxu0 0.0
    %1567 = vmatprep.subr.mxu0 0.0
    %1568 = vmatpush1.msra.mxu0 0.0
    %1569 = vmatprep.subr.mxu0 0.0
    %1570 = vmatpush1.msra.mxu0 0.0
    %1571 = vmatprep.subr.mxu0 0.0
    %1572 = vmatpush1.msra.mxu0 0.0
    %1573 = vmatprep.subr.mxu0 0.0
    %1574 = vmatpush1.msra.mxu0 0.0
    %1575 = vmatprep.subr.mxu0 0.0
    %1576 = vmatpush1.msra.mxu0 0.0
    %1577 = vmatprep.subr.mxu0 0.0
    %1578 = vmatpush1.msra.mxu0 0.0
    %1579 = vmatprep.subr.mxu0 0.0
    %1580 = vmatpush1.msra.mxu0 0.0
    %1581 = vmatprep.subr.mxu0 0.0
    %1582 = vmatpush1.msra.mxu0 0.0
    %1583 = vmatprep.subr.mxu0 0.0
    %1584 = vmatpush1.msra.mxu0 0.0
    %1585 = vmatprep.subr.mxu0 0.0
    %1586 = vmatpush1.msra.mxu0 0.0
    %1587 = vmatprep.subr.mxu0 0.0
    %1588 = vmatpush1.msra.mxu0 0.0
    %1589 = vmatprep.subr.mxu0 0.0
    %1590 = vmatpush1.msra.mxu0 0.0
    %1591 = vmatprep.subr.mxu0 0.0
    %1592 = vmatpush1.msra.mxu0 0.0
    %1593 = vmatprep.subr.mxu0 0.0
    %1594 = vmatpush1.msra.mxu0 0.0
    %1595 = vmatprep.subr.mxu0 0.0
    %1596 = vmatpush1.msra.mxu0 0.0
    %1597 = vmatprep.subr.mxu0 0.0
    %1598 = vmatpush1.msra.mxu0 0.0
    %1599 = vmatprep.subr.mxu0 0.0
    %1600 = vmatpush1.msra.mxu0 0.0
    %1601 = vmatprep.subr.mxu0 0.0
    %1602 = vmatpush1.msra.mxu0 0.0
    %1603 = vmatprep.subr.mxu0 0.0
    %1604 = vmatpush1.msra.mxu0 0.0
    %1605 = vmatprep.subr.mxu0 0.0
    %1606 = vmatpush1.msra.mxu0 0.0
    %1607 = vmatprep.mubr.f32.mxu0 0.0
    %1608 = vmatmul.mubr.f32.gmra.mrb[0].mxu0 %v1541
    %v1609 = vpop.f32.mrb[0].mxu0
    %v1610 = vadd.f32 0.0, %v1609
    %v1611 = vpop.f32.mrb[0].mxu0
    %1612 = vdwg.mxu0
    %v1614 = vrot.slane %v1610, 4
    %v1616 = vadd.f32 %v1074, %v1614
    %v1617 = vtanh.pop %v1616
    %v1619 = vrot.slane %v1617, 4
    %v1620 = vsel %vm203, %v1619, 0
    %1622 = vmatprep.subr.mxu0 0.0
    %1623 = vmatpush1.msra.mxu0 %v984
    %1624 = vmatprep.subr.mxu0 0.0
    %1625 = vmatpush1.msra.mxu0 %v985
    %1626 = vmatprep.subr.mxu0 0.0
    %1627 = vmatpush1.msra.mxu0 %v986
    %1628 = vmatprep.subr.mxu0 0.0
    %1629 = vmatpush1.msra.mxu0 %v987
    %1630 = vmatprep.subr.mxu0 0.0
    %1631 = vmatpush1.msra.mxu0 0.0
    %1632 = vmatprep.subr.mxu0 0.0
    %1633 = vmatpush1.msra.mxu0 0.0
    %1634 = vmatprep.subr.mxu0 0.0
    %1635 = vmatpush1.msra.mxu0 0.0
    %1636 = vmatprep.subr.mxu0 0.0
    %1637 = vmatpush1.msra.mxu0 0.0
    %1638 = vmatprep.subr.mxu0 0.0
    %1639 = vmatpush1.msra.mxu0 0.0
    %1640 = vmatprep.subr.mxu0 0.0
    %1641 = vmatpush1.msra.mxu0 0.0
    %1642 = vmatprep.subr.mxu0 0.0
    %1643 = vmatpush1.msra.mxu0 0.0
    %1644 = vmatprep.subr.mxu0 0.0
    %1645 = vmatpush1.msra.mxu0 0.0
    %1646 = vmatprep.subr.mxu0 0.0
    %1647 = vmatpush1.msra.mxu0 0.0
    %1648 = vmatprep.subr.mxu0 0.0
    %1649 = vmatpush1.msra.mxu0 0.0
    %1650 = vmatprep.subr.mxu0 0.0
    %1651 = vmatpush1.msra.mxu0 0.0
    %1652 = vmatprep.subr.mxu0 0.0
    %1653 = vmatpush1.msra.mxu0 0.0
    %1654 = vmatprep.subr.mxu0 0.0
    %1655 = vmatpush1.msra.mxu0 0.0
    %1656 = vmatprep.subr.mxu0 0.0
    %1657 = vmatpush1.msra.mxu0 0.0
    %1658 = vmatprep.subr.mxu0 0.0
    %1659 = vmatpush1.msra.mxu0 0.0
    %1660 = vmatprep.subr.mxu0 0.0
    %1661 = vmatpush1.msra.mxu0 0.0
    %1662 = vmatprep.subr.mxu0 0.0
    %1663 = vmatpush1.msra.mxu0 0.0
    %1664 = vmatprep.subr.mxu0 0.0
    %1665 = vmatpush1.msra.mxu0 0.0
    %1666 = vmatprep.subr.mxu0 0.0
    %1667 = vmatpush1.msra.mxu0 0.0
    %1668 = vmatprep.subr.mxu0 0.0
    %1669 = vmatpush1.msra.mxu0 0.0
    %1670 = vmatprep.subr.mxu0 0.0
    %1671 = vmatpush1.msra.mxu0 0.0
    %1672 = vmatprep.subr.mxu0 0.0
    %1673 = vmatpush1.msra.mxu0 0.0
    %1674 = vmatprep.subr.mxu0 0.0
    %1675 = vmatpush1.msra.mxu0 0.0
    %1676 = vmatprep.subr.mxu0 0.0
    %1677 = vmatpush1.msra.mxu0 0.0
    %1678 = vmatprep.subr.mxu0 0.0
    %1679 = vmatpush1.msra.mxu0 0.0
    %1680 = vmatprep.subr.mxu0 0.0
    %1681 = vmatpush1.msra.mxu0 0.0
    %1682 = vmatprep.subr.mxu0 0.0
    %1683 = vmatpush1.msra.mxu0 0.0
    %1684 = vmatprep.subr.mxu0 0.0
    %1685 = vmatpush1.msra.mxu0 0.0
    %1686 = vmatprep.mubr.f32.mxu0 0.0
    %1687 = vmatmul.mubr.f32.gmra.mrb[0].mxu0 %v1620
    %v1688 = vpop.f32.mrb[0].mxu0
    %v1689 = vadd.f32 0.0, %v1688
    %v1690 = vpop.f32.mrb[0].mxu0
    %1691 = vdwg.mxu0
    %v1693 = vrot.slane %v1689, 2
    %v1695 = vadd.f32 %v1074, %v1693
    %v1696 = vtanh.pop %v1695
    %s1697 = scalar_lea.vmem [#allocation12], 2
    %1698 = vst.msk [vmem:[%s1697 - $0x6] sm:$0xc0] %vm968, %v1696
    %v1699 = vld [vmem:[%s8] sm:$0xff]
    %v1700 = vld [vmem:[%s8 + $0x8] sm:$0xff]
    %v1701 = vld [vmem:[%s8 + $0x10] sm:$0xff]
    %v1702 = vld [vmem:[%s8 + $0x18] sm:$0xff]
    %v1703 = vld [vmem:[%s9] sm:$0x1]
    %v1705 = vlaneseq
    %v1706 = vshrl.u32 %v1705, 7
    %v1707 = vsub.s32 0, %v1706
    %v1708 = vrot.slane %v1703, %v1707
    %v1711 = vrot.slane %v1696, 6
    %v1712 = vsel %vm203, %v1711, 0
    %1714 = vmatprep.subr.mxu0 0.0
    %1715 = vmatpush1.msra.mxu0 %v1699
    %1716 = vmatprep.subr.mxu0 0.0
    %1717 = vmatpush1.msra.mxu0 %v1700
    %1718 = vmatprep.subr.mxu0 0.0
    %1719 = vmatpush1.msra.mxu0 %v1701
    %1720 = vmatprep.subr.mxu0 0.0
    %1721 = vmatpush1.msra.mxu0 %v1702
    %1722 = vmatprep.subr.mxu0 0.0
    %1723 = vmatpush1.msra.mxu0 0.0
    %1724 = vmatprep.subr.mxu0 0.0
    %1725 = vmatpush1.msra.mxu0 0.0
    %1726 = vmatprep.subr.mxu0 0.0
    %1727 = vmatpush1.msra.mxu0 0.0
    %1728 = vmatprep.subr.mxu0 0.0
    %1729 = vmatpush1.msra.mxu0 0.0
    %1730 = vmatprep.subr.mxu0 0.0
    %1731 = vmatpush1.msra.mxu0 0.0
    %1732 = vmatprep.subr.mxu0 0.0
    %1733 = vmatpush1.msra.mxu0 0.0
    %1734 = vmatprep.subr.mxu0 0.0
    %1735 = vmatpush1.msra.mxu0 0.0
    %1736 = vmatprep.subr.mxu0 0.0
    %1737 = vmatpush1.msra.mxu0 0.0
    %1738 = vmatprep.subr.mxu0 0.0
    %1739 = vmatpush1.msra.mxu0 0.0
    %1740 = vmatprep.subr.mxu0 0.0
    %1741 = vmatpush1.msra.mxu0 0.0
    %1742 = vmatprep.subr.mxu0 0.0
    %1743 = vmatpush1.msra.mxu0 0.0
    %1744 = vmatprep.subr.mxu0 0.0
    %1745 = vmatpush1.msra.mxu0 0.0
    %1746 = vmatprep.subr.mxu0 0.0
    %1747 = vmatpush1.msra.mxu0 0.0
    %1748 = vmatprep.subr.mxu0 0.0
    %1749 = vmatpush1.msra.mxu0 0.0
    %1750 = vmatprep.subr.mxu0 0.0
    %1751 = vmatpush1.msra.mxu0 0.0
    %1752 = vmatprep.subr.mxu0 0.0
    %1753 = vmatpush1.msra.mxu0 0.0
    %1754 = vmatprep.subr.mxu0 0.0
    %1755 = vmatpush1.msra.mxu0 0.0
    %1756 = vmatprep.subr.mxu0 0.0
    %1757 = vmatpush1.msra.mxu0 0.0
    %1758 = vmatprep.subr.mxu0 0.0
    %1759 = vmatpush1.msra.mxu0 0.0
    %1760 = vmatprep.subr.mxu0 0.0
    %1761 = vmatpush1.msra.mxu0 0.0
    %1762 = vmatprep.subr.mxu0 0.0
    %1763 = vmatpush1.msra.mxu0 0.0
    %1764 = vmatprep.subr.mxu0 0.0
    %1765 = vmatpush1.msra.mxu0 0.0
    %1766 = vmatprep.subr.mxu0 0.0
    %1767 = vmatpush1.msra.mxu0 0.0
    %1768 = vmatprep.subr.mxu0 0.0
    %1769 = vmatpush1.msra.mxu0 0.0
    %1770 = vmatprep.subr.mxu0 0.0
    %1771 = vmatpush1.msra.mxu0 0.0
    %1772 = vmatprep.subr.mxu0 0.0
    %1773 = vmatpush1.msra.mxu0 0.0
    %1774 = vmatprep.subr.mxu0 0.0
    %1775 = vmatpush1.msra.mxu0 0.0
    %1776 = vmatprep.subr.mxu0 0.0
    %1777 = vmatpush1.msra.mxu0 0.0
    %1778 = vmatprep.mubr.f32.mxu0 0.0
    %1779 = vmatmul.mubr.f32.gmra.mrb[0].mxu0 %v1712
    %v1780 = vpop.f32.mrb[0].mxu0
    %v1781 = vadd.f32 %v1708, %v1780
    %v1782 = vpop.f32.mrb[0].mxu0
    %1783 = vdwg.mxu0
    %vm1784 = vcmask 123904
    %1785 = vst.msk [vmem:[#allocation11] sm:$0x3] %vm1784, %v1781
    // Predicated region
    $region62: #{rnn_forward.1} parent=1 // pred_check
      _
    $region63: #{rnn_forward.1} parent=1 // pred_check_branch
      %1787 = sbr.rel (0) target = $region65
    $region64: #{rnn_forward.1} parent=1 // pred_region
      %s1789 = ssub.s32 32, 32
      %1790 = vsyncadd [#allocation4], %s1789
      %s1792 = sshll.u32 [#allocation11], 4
      %s1793 = int_to_ptr.vmem [resolvable:$true] %s1792
      %1795 = dma.vmem_to_hbm [thread:$0]  %s1793, 32, %s10, [#allocation4]
    $region65: #{rnn_forward.1} parent=1 // pred_fallthru
      _
    // Predicated region
    $region66: #{rnn_forward.1} parent=1 // pred_check
      _
    $region67: #{rnn_forward.1} parent=1 // pred_check_branch
      %1797 = sbr.rel (0) target = $region69
    $region68: #{rnn_forward.1} parent=1 // pred_region
      %s1799 = ssub.s32 64, 64
      %1800 = vsyncadd [#allocation13], %s1799
      %s1801 = sshll.u32 [#allocation12], 4
      %s1802 = int_to_ptr.vmem [resolvable:$true] %s1801
      %1807 = dma.vmem_to_hbm [thread:$0]  %s1802, 64, %s11, [#allocation13], 32, 32, 2
    $region69: #{rnn_forward.1} parent=1 // pred_fallthru
      _
    // Predicated region
    $region70: #{rnn_forward.1} parent=1 // pred_check
      _
    $region71: #{rnn_forward.1} parent=1 // pred_check_branch
      %1809 = sbr.rel (0) target = $region73
    $region72: #{rnn_forward.1} parent=1 // pred_region
      %1810 = dma.done [#allocation4], 32
    $region73: #{rnn_forward.1} parent=1 // pred_fallthru
      _
    // Predicated region
    $region74: #{rnn_forward.1} parent=1 // pred_check
      _
    $region75: #{rnn_forward.1} parent=1 // pred_check_branch
      %1812 = sbr.rel (0) target = $region77
    $region76: #{rnn_forward.1} parent=1 // pred_region
      %1813 = dma.done [#allocation13], 64
    $region77: #{rnn_forward.1} parent=1 // pred_fallthru
      _
    %1814 = vsyncpa [#allocation3], 1
    %1815 = vsyncpa [#allocation6], 1
    %1816 = vsyncpa [#allocation9], 1
    %1817 = vsyncpa [#allocation4], 1
    %1818 = vsyncpa [#allocation13], 1

</llo_original>
